<compile_context>
chip_gen: v6e
topology: v6e:2x2x1
jax: 0.10.0
libtpu: 0.0.40
codegen_flags: <defaults>
</compile_context>

<pallas_src>
import functools

import numpy as np
import jax
import jax.numpy as jnp
from jax import lax
from jax.experimental import pallas as pl
from jax.experimental.pallas import tpu as pltpu

BN_EPS = 1e-5
_VMEM_LIMIT = 32 * 1024 * 1024  # explicit scoped-VMEM budget, safe on v5e/v6e/v7x


def _round_up(v, m):
    return ((v + m - 1) // m) * m


def _compiler_params():
    return pltpu.CompilerParams(dimension_semantics=("parallel",),
                                vmem_limit_bytes=_VMEM_LIMIT)


# ---------------------------------------------------------------------------
# Pallas kernels (all matmuls: bf16 operands, fp32 accumulation on the MXU;
# all BatchNorm/ReLU vector math stays fp32 on the VPU).
# ---------------------------------------------------------------------------
def _conv_kernel(x_ref, w_ref, y_ref):
    # pool_size == 1: AvgPool is the identity -> just the 1x1 conv.
    x = x_ref[0].astype(jnp.bfloat16)                       # (C_blk, S)
    y_ref[0] = jnp.dot(w_ref[...], x, preferred_element_type=jnp.float32)


def _pool_conv_kernel(x_ref, pt_ref, w_ref, y_ref):
    x = x_ref[0].astype(jnp.bfloat16)                       # (C_blk, S)
    pooled = jnp.dot(x, pt_ref[...],
                     preferred_element_type=jnp.float32)    # (C_blk, Sp)
    y_ref[0] = jnp.dot(w_ref[...], pooled.astype(jnp.bfloat16),
                       preferred_element_type=jnp.float32)  # (C_out, Sp)


def _bn_relu_kernel(y_ref, scale_ref, bias_ref, o_ref):
    # pool_size == 1: upsample is the identity -> fused FMA + ReLU only.
    o_ref[0] = jnp.maximum(y_ref[0] * scale_ref[...] + bias_ref[...], 0.0)


def _bn_relu_up_kernel(y_ref, scale_ref, bias_ref, ut_ref, o_ref):
    z = jnp.maximum(y_ref[0] * scale_ref[...] + bias_ref[...], 0.0)   # fp32
    o_ref[0] = jnp.dot(z.astype(jnp.bfloat16), ut_ref[...],
                       preferred_element_type=jnp.float32)  # (C_out, S) lane-dense


# ---------------------------------------------------------------------------
# pallas_call wrappers (grid over batch N, parallel -> uses both TCs on v7x)
# ---------------------------------------------------------------------------
def _pool_conv_call(feat, w_pad, pool_t, sp):
    n, _, s = feat.shape
    c_out, c_blk = w_pad.shape
    x_spec = pl.BlockSpec((1, c_blk, s), lambda i: (i, 0, 0))
    w_spec = pl.BlockSpec((c_out, c_blk), lambda i: (0, 0))
    out_spec = pl.BlockSpec((1, c_out, sp), lambda i: (i, 0, 0))
    out_shape = jax.ShapeDtypeStruct((n, c_out, sp), jnp.float32)
    if pool_t is None:
        return pl.pallas_call(
            _conv_kernel, out_shape=out_shape, grid=(n,),
            in_specs=[x_spec, w_spec], out_specs=out_spec,
            compiler_params=_compiler_params())(feat, w_pad)
    p_spec = pl.BlockSpec((s, sp), lambda i: (0, 0))
    return pl.pallas_call(
        _pool_conv_kernel, out_shape=out_shape, grid=(n,),
        in_specs=[x_spec, p_spec, w_spec], out_specs=out_spec,
        compiler_params=_compiler_params())(feat, pool_t, w_pad)


def _bn_relu_up_call(y, scale, bias, up_t, s):
    n, c_out, sp = y.shape
    y_spec = pl.BlockSpec((1, c_out, sp), lambda i: (i, 0, 0))
    v_spec = pl.BlockSpec((c_out, 1), lambda i: (0, 0))
    out_spec = pl.BlockSpec((1, c_out, s), lambda i: (i, 0, 0))
    out_shape = jax.ShapeDtypeStruct((n, c_out, s), jnp.float32)
    if up_t is None:
        return pl.pallas_call(
            _bn_relu_kernel, out_shape=out_shape, grid=(n,),
            in_specs=[y_spec, v_spec, v_spec], out_specs=out_spec,
            compiler_params=_compiler_params())(y, scale, bias)
    u_spec = pl.BlockSpec((sp, s), lambda i: (0, 0))
    return pl.pallas_call(
        _bn_relu_up_kernel, out_shape=out_shape, grid=(n,),
        in_specs=[y_spec, v_spec, v_spec, u_spec], out_specs=out_spec,
        compiler_params=_compiler_params())(y, scale, bias, up_t)


# ---------------------------------------------------------------------------
# Static linear operators for AvgPool2d and bilinear(align_corners=True)
# ---------------------------------------------------------------------------
def _avgpool_matrix(size, p):
    """(size//p, size) matrix implementing AvgPool1d(kernel=p, stride=p)."""
    outp = size // p
    mat = np.zeros((outp, size), np.float32)
    for i in range(outp):
        mat[i, i * p:(i + 1) * p] = 1.0 / p
    return mat


def _upsample_matrix(out_size, in_size):
    """(out_size, in_size) 1-D linear interpolation, align_corners=True."""
    mat = np.zeros((out_size, in_size), np.float32)
    for o in range(out_size):
        if in_size == 1:
            mat[o, 0] = 1.0
            continue
        src = 0.0 if out_size == 1 else o * (in_size - 1) / (out_size - 1)
        lo = min(int(np.floor(src)), in_size - 1)
        frac = src - lo
        mat[o, lo] += 1.0 - frac
        if frac > 0.0:
            mat[o, lo + 1] += frac
    return mat


@functools.lru_cache(maxsize=None)
def _stage_operators(h, w, pool_size):
    """Cached dense pool/upsample operators in bf16 (pool_size > 1 only).

    NOTE: at very large H*W these dense Kronecker operators should be replaced
    by their separable 1-D factors; at PPM bin sizes they are tiny and keep
    every in-kernel matmul a plain 2-D MXU op (and the pool_size==1 identity
    case -- the only genuinely huge operator -- is skipped entirely).
    """
    hp, wp = h // pool_size, w // pool_size
    pool_t = np.kron(_avgpool_matrix(h, pool_size),
                     _avgpool_matrix(w, pool_size)).T          # (S, Sp)
    up_t = np.kron(_upsample_matrix(h, hp),
                   _upsample_matrix(w, wp)).T                  # (Sp, S)
    return (jnp.asarray(pool_t, jnp.bfloat16),
            jnp.asarray(up_t, jnp.bfloat16))


# ---------------------------------------------------------------------------
# DensePPM module (parameters initialized deterministically in-script)
# ---------------------------------------------------------------------------
class DensePPMPallas:
    def __init__(self, in_channels, reduction_dim, pool_sizes, key):
        self.in_channels = in_channels
        self.pool_sizes = tuple(pool_sizes)
        self.params = []
        n = 1
        for _ in self.pool_sizes:
            cin = in_channels + reduction_dim * ((n * n - n) // 2)
            cout = reduction_dim * n
            key, kw, kg, kb = jax.random.split(key, 4)
            # Conv2d(k=1, bias=False): uniform in [-1/sqrt(cin), 1/sqrt(cin)]
            bound = 1.0 / np.sqrt(cin)
            wmat = jax.random.uniform(kw, (cout, cin), jnp.float32, -bound, bound)
            gamma = 1.0 + 0.1 * jax.random.normal(kg, (cout,), jnp.float32)
            beta = 0.1 * jax.random.normal(kb, (cout,), jnp.float32)
            self.params.append((wmat, gamma, beta))
            n += 1
        self._forward = jax.jit(self._forward_impl)

    def _forward_impl(self, x):
        n, c0, h, w = x.shape
        s = h * w
        c_total = c0 + sum(p[0].shape[0] for p in self.params)
        # Preallocated dense-concat buffer (replaces growing torch.cat copies).
        feat = jnp.zeros((n, c_total, s), jnp.float32)
        feat = lax.dynamic_update_slice(feat, x.reshape(n, c0, s), (0, 0, 0))
        c_off = c0
        for pool_size, (wmat, gamma, beta) in zip(self.pool_sizes, self.params):
            c_out, c_in = wmat.shape
            # The stage reads its first c_in channels straight from `feat`;
            # the second-minor block dim must be a multiple of 8 (or full),
            # so round up and zero-pad the conv weight's input channels.
            c_blk = min(_round_up(c_in, 8), c_total)
            w_pad = jnp.pad(wmat.astype(jnp.bfloat16),
                            ((0, 0), (0, c_blk - c_in)))
            if pool_size == 1:
                pool_t = up_t = None
                sp = s
            else:
                assert h % pool_size == 0 and w % pool_size == 0
                sp = (h // pool_size) * (w // pool_size)
                pool_t, up_t = _stage_operators(h, w, pool_size)

            # --- kernel A: avg-pool + 1x1 conv (grid over N, parallel) -----
            y = _pool_conv_call(feat, w_pad, pool_t, sp)

            # --- BatchNorm2d training-mode batch stats (biased variance).
            # They couple every sample, so this tiny per-channel reduction is
            # computed in XLA between the two Pallas calls and folded into a
            # single scale/bias FMA consumed by kernel B.
            mean = jnp.mean(y, axis=(0, 2))
            var = jnp.mean(jnp.square(y - mean[None, :, None]), axis=(0, 2))
            inv = lax.rsqrt(var + BN_EPS)
            scale = (gamma * inv)[:, None]                       # (C_out, 1)
            bias = (beta - mean * gamma * inv)[:, None]          # (C_out, 1)

            # --- kernel B: BN affine + ReLU + bilinear upsample ------------
            out = _bn_relu_up_call(y, scale, bias, up_t, s)
            feat = lax.dynamic_update_slice(feat, out, (0, c_off, 0))
            c_off += c_out
        return feat.reshape(n, c_total, h, w)

    def __call__(self, x):
        return self._forward(x)


if __name__ == "__main__":
    key = jax.random.PRNGKey(0)
    kx, kp = jax.random.split(key)

    # Small shapes consistent with the module: NCHW input.
    x = jax.random.normal(kx, (2, 4, 16, 16), jnp.float32)

    model = DensePPMPallas(in_channels=4, reduction_dim=4,
                           pool_sizes=(1, 2, 4), key=kp)
    y = model(x)
    y = jax.block_until_ready(y)

    # channels: 4 + 4*1 + 4*2 + 4*3 = 28
    assert y.shape == (2, 28, 16, 16), y.shape
    assert bool(jnp.all(jnp.isfinite(y)))
    # dense-concat semantics: first in_channels channels are the input itself
    assert bool(jnp.allclose(y[:, :4], x))
    print("KERNEL_OK")
</pallas_src>

<mosaic_0001>
module attributes {stable_mosaic.version = 11 : i64} {
  func.func @_conv_kernel(%arg0: i32, %arg1: memref<1x8x256xf32, #tpu.memory_space<vmem>>, %arg2: memref<4x8xbf16, #tpu.memory_space<vmem>>, %arg3: memref<1x4x256xf32, #tpu.memory_space<vmem>>) attributes {dimension_semantics = [#tpu.dimension_semantics<parallel>], iteration_bounds = array<i64: 2>, scalar_prefetch = 0 : i64, scratch_operands = 0 : i64, tpu.core_type = #tpu.core_type<tc>, window_params = [{transform_indices = @transform_0, window_bounds = array<i64: 1, 8, 256>}, {pipeline_mode = #tpu.pipeline_mode<synchronous>, transform_indices = @transform_1, window_bounds = array<i64: 4, 8>}, {transform_indices = @transform_2, window_bounds = array<i64: 1, 4, 256>}]} {
    %c0 = arith.constant 0 : index
    %c0_0 = arith.constant 0 : index
    %c0_1 = arith.constant 0 : index
    %0 = vector.load %arg1[%c0, %c0_0, %c0_1] : memref<1x8x256xf32, #tpu.memory_space<vmem>>, vector<1x8x256xf32>
    %1 = vector.shape_cast %0 : vector<1x8x256xf32> to vector<8x256xf32>
    %2 = arith.truncf %1 : vector<8x256xf32> to vector<8x256xbf16>
    %c0_2 = arith.constant 0 : index
    %c0_3 = arith.constant 0 : index
    %3 = vector.load %arg2[%c0_2, %c0_3] : memref<4x8xbf16, #tpu.memory_space<vmem>>, vector<4x8xbf16>
    %cst = arith.constant dense<0.000000e+00> : vector<4x256xf32>
    %4 = tpu.matmul %3, %2, %cst {dimension_numbers = #tpu.dot_dimension_numbers<[1], [0], [0], [1], [0, 0, 1, 1], [], []>} : vector<4x8xbf16>, vector<8x256xbf16>, vector<4x256xf32> -> vector<4x256xf32>
    %c0_4 = arith.constant 0 : index
    %c0_5 = arith.constant 0 : index
    %c0_6 = arith.constant 0 : index
    %5 = vector.load %arg3[%c0_4, %c0_5, %c0_6] : memref<1x4x256xf32, #tpu.memory_space<vmem>>, vector<1x4x256xf32>
    %6 = vector.shape_cast %5 : vector<1x4x256xf32> to vector<4x256xf32>
    %7 = vector.shape_cast %4 : vector<4x256xf32> to vector<1x4x256xf32>
    tpu.vector_store %arg3[%c0_4, %c0_5, %c0_6], %7 {strides = array<i32>} : memref<1x4x256xf32, #tpu.memory_space<vmem>>, vector<1x4x256xf32>,
    return
  }
  func.func @transform_0(%arg0: i32) -> (i32, i32, i32) {
    %c0_i32 = arith.constant 0 : i32
    %c0_i32_0 = arith.constant 0 : i32
    %c0_i32_1 = arith.constant 0 : i32
    return %arg0, %c0_i32, %c0_i32_0 : i32, i32, i32
  }
  func.func @transform_1(%arg0: i32) -> (i32, i32) {
    %c0_i32 = arith.constant 0 : i32
    %c0_i32_0 = arith.constant 0 : i32
    %c0_i32_1 = arith.constant 0 : i32
    return %c0_i32, %c0_i32_0 : i32, i32
  }
  func.func @transform_2(%arg0: i32) -> (i32, i32, i32) {
    %c0_i32 = arith.constant 0 : i32
    %c0_i32_0 = arith.constant 0 : i32
    %c0_i32_1 = arith.constant 0 : i32
    return %arg0, %c0_i32, %c0_i32_0 : i32, i32, i32
  }
}

module attributes {stable_mosaic.version = 11 : i64} {
  func.func @_bn_relu_kernel(%arg0: i32, %arg1: memref<1x4x256xf32, #tpu.memory_space<vmem>>, %arg2: memref<4x1xf32, #tpu.memory_space<vmem>>, %arg3: memref<4x1xf32, #tpu.memory_space<vmem>>, %arg4: memref<1x4x256xf32, #tpu.memory_space<vmem>>) attributes {dimension_semantics = [#tpu.dimension_semantics<parallel>], iteration_bounds = array<i64: 2>, scalar_prefetch = 0 : i64, scratch_operands = 0 : i64, tpu.core_type = #tpu.core_type<tc>, window_params = [{transform_indices = @transform_0, window_bounds = array<i64: 1, 4, 256>}, {pipeline_mode = #tpu.pipeline_mode<synchronous>, transform_indices = @transform_1, window_bounds = array<i64: 4, 1>}, {pipeline_mode = #tpu.pipeline_mode<synchronous>, transform_indices = @transform_2, window_bounds = array<i64: 4, 1>}, {transform_indices = @transform_3, window_bounds = array<i64: 1, 4, 256>}]} {
    %c0 = arith.constant 0 : index
    %c0_0 = arith.constant 0 : index
    %c0_1 = arith.constant 0 : index
    %0 = vector.load %arg1[%c0, %c0_0, %c0_1] : memref<1x4x256xf32, #tpu.memory_space<vmem>>, vector<1x4x256xf32>
    %1 = vector.shape_cast %0 : vector<1x4x256xf32> to vector<4x256xf32>
    %c0_2 = arith.constant 0 : index
    %c0_3 = arith.constant 0 : index
    %2 = vector.load %arg2[%c0_2, %c0_3] : memref<4x1xf32, #tpu.memory_space<vmem>>, vector<4x1xf32>
    %3 = vector.broadcast %2 : vector<4x1xf32> to vector<4x256xf32>
    %4 = arith.mulf %1, %3 : vector<4x256xf32>
    %c0_4 = arith.constant 0 : index
    %c0_5 = arith.constant 0 : index
    %5 = vector.load %arg3[%c0_4, %c0_5] : memref<4x1xf32, #tpu.memory_space<vmem>>, vector<4x1xf32>
    %6 = vector.broadcast %5 : vector<4x1xf32> to vector<4x256xf32>
    %7 = arith.addf %4, %6 : vector<4x256xf32>
    %cst = arith.constant 0.000000e+00 : f32
    %8 = vector.broadcast %cst : f32 to vector<4x256xf32>
    %9 = arith.maximumf %7, %8 : vector<4x256xf32>
    %c0_6 = arith.constant 0 : index
    %c0_7 = arith.constant 0 : index
    %c0_8 = arith.constant 0 : index
    %10 = vector.load %arg4[%c0_6, %c0_7, %c0_8] : memref<1x4x256xf32, #tpu.memory_space<vmem>>, vector<1x4x256xf32>
    %11 = vector.shape_cast %10 : vector<1x4x256xf32> to vector<4x256xf32>
    %12 = vector.shape_cast %9 : vector<4x256xf32> to vector<1x4x256xf32>
    tpu.vector_store %arg4[%c0_6, %c0_7, %c0_8], %12 {strides = array<i32>} : memref<1x4x256xf32, #tpu.memory_space<vmem>>, vector<1x4x256xf32>,
    return
  }
  func.func @transform_0(%arg0: i32) -> (i32, i32, i32) {
    %c0_i32 = arith.constant 0 : i32
    %c0_i32_0 = arith.constant 0 : i32
    %c0_i32_1 = arith.constant 0 : i32
    return %arg0, %c0_i32, %c0_i32_0 : i32, i32, i32
  }
  func.func @transform_1(%arg0: i32) -> (i32, i32) {
    %c0_i32 = arith.constant 0 : i32
    %c0_i32_0 = arith.constant 0 : i32
    %c0_i32_1 = arith.constant 0 : i32
    return %c0_i32, %c0_i32_0 : i32, i32
  }
  func.func @transform_2(%arg0: i32) -> (i32, i32) {
    %c0_i32 = arith.constant 0 : i32
    %c0_i32_0 = arith.constant 0 : i32
    %c0_i32_1 = arith.constant 0 : i32
    return %c0_i32, %c0_i32_0 : i32, i32
  }
  func.func @transform_3(%arg0: i32) -> (i32, i32, i32) {
    %c0_i32 = arith.constant 0 : i32
    %c0_i32_0 = arith.constant 0 : i32
    %c0_i32_1 = arith.constant 0 : i32
    return %arg0, %c0_i32, %c0_i32_0 : i32, i32, i32
  }
}

module attributes {stable_mosaic.version = 11 : i64} {
  func.func @_pool_conv_kernel(%arg0: i32, %arg1: memref<1x8x256xf32, #tpu.memory_space<vmem>>, %arg2: memref<256x64xbf16, #tpu.memory_space<vmem>>, %arg3: memref<8x8xbf16, #tpu.memory_space<vmem>>, %arg4: memref<1x8x64xf32, #tpu.memory_space<vmem>>) attributes {dimension_semantics = [#tpu.dimension_semantics<parallel>], iteration_bounds = array<i64: 2>, scalar_prefetch = 0 : i64, scratch_operands = 0 : i64, tpu.core_type = #tpu.core_type<tc>, window_params = [{transform_indices = @transform_0, window_bounds = array<i64: 1, 8, 256>}, {pipeline_mode = #tpu.pipeline_mode<synchronous>, transform_indices = @transform_1, window_bounds = array<i64: 256, 64>}, {pipeline_mode = #tpu.pipeline_mode<synchronous>, transform_indices = @transform_2, window_bounds = array<i64: 8, 8>}, {transform_indices = @transform_3, window_bounds = array<i64: 1, 8, 64>}]} {
    %c0 = arith.constant 0 : index
    %c0_0 = arith.constant 0 : index
    %c0_1 = arith.constant 0 : index
    %0 = vector.load %arg1[%c0, %c0_0, %c0_1] : memref<1x8x256xf32, #tpu.memory_space<vmem>>, vector<1x8x256xf32>
    %1 = vector.shape_cast %0 : vector<1x8x256xf32> to vector<8x256xf32>
    %2 = arith.truncf %1 : vector<8x256xf32> to vector<8x256xbf16>
    %c0_2 = arith.constant 0 : index
    %c0_3 = arith.constant 0 : index
    %3 = vector.load %arg2[%c0_2, %c0_3] : memref<256x64xbf16, #tpu.memory_space<vmem>>, vector<256x64xbf16>
    %cst = arith.constant dense<0.000000e+00> : vector<8x64xf32>
    %4 = tpu.matmul %2, %3, %cst {dimension_numbers = #tpu.dot_dimension_numbers<[1], [0], [0], [1], [0, 0, 1, 1], [], []>} : vector<8x256xbf16>, vector<256x64xbf16>, vector<8x64xf32> -> vector<8x64xf32>
    %c0_4 = arith.constant 0 : index
    %c0_5 = arith.constant 0 : index
    %5 = vector.load %arg3[%c0_4, %c0_5] : memref<8x8xbf16, #tpu.memory_space<vmem>>, vector<8x8xbf16>
    %6 = arith.truncf %4 : vector<8x64xf32> to vector<8x64xbf16>
    %cst_6 = arith.constant dense<0.000000e+00> : vector<8x64xf32>
    %7 = tpu.matmul %5, %6, %cst_6 {dimension_numbers = #tpu.dot_dimension_numbers<[1], [0], [0], [1], [0, 0, 1, 1], [], []>} : vector<8x8xbf16>, vector<8x64xbf16>, vector<8x64xf32> -> vector<8x64xf32>
    %c0_7 = arith.constant 0 : index
    %c0_8 = arith.constant 0 : index
    %c0_9 = arith.constant 0 : index
    %8 = vector.load %arg4[%c0_7, %c0_8, %c0_9] : memref<1x8x64xf32, #tpu.memory_space<vmem>>, vector<1x8x64xf32>
    %9 = vector.shape_cast %8 : vector<1x8x64xf32> to vector<8x64xf32>
    %10 = vector.shape_cast %7 : vector<8x64xf32> to vector<1x8x64xf32>
    tpu.vector_store %arg4[%c0_7, %c0_8, %c0_9], %10 {strides = array<i32>} : memref<1x8x64xf32, #tpu.memory_space<vmem>>, vector<1x8x64xf32>,
    return
  }
  func.func @transform_0(%arg0: i32) -> (i32, i32, i32) {
    %c0_i32 = arith.constant 0 : i32
    %c0_i32_0 = arith.constant 0 : i32
    %c0_i32_1 = arith.constant 0 : i32
    return %arg0, %c0_i32, %c0_i32_0 : i32, i32, i32
  }
  func.func @transform_1(%arg0: i32) -> (i32, i32) {
    %c0_i32 = arith.constant 0 : i32
    %c0_i32_0 = arith.constant 0 : i32
    %c0_i32_1 = arith.constant 0 : i32
    return %c0_i32, %c0_i32_0 : i32, i32
  }
  func.func @transform_2(%arg0: i32) -> (i32, i32) {
    %c0_i32 = arith.constant 0 : i32
    %c0_i32_0 = arith.constant 0 : i32
    %c0_i32_1 = arith.constant 0 : i32
    return %c0_i32, %c0_i32_0 : i32, i32
  }
  func.func @transform_3(%arg0: i32) -> (i32, i32, i32) {
    %c0_i32 = arith.constant 0 : i32
    %c0_i32_0 = arith.constant 0 : i32
    %c0_i32_1 = arith.constant 0 : i32
    return %arg0, %c0_i32, %c0_i32_0 : i32, i32, i32
  }
}

module attributes {stable_mosaic.version = 11 : i64} {
  func.func @_pool_conv_kernel(%arg0: i32, %arg1: memref<1x16x256xf32, #tpu.memory_space<vmem>>, %arg2: memref<256x16xbf16, #tpu.memory_space<vmem>>, %arg3: memref<12x16xbf16, #tpu.memory_space<vmem>>, %arg4: memref<1x12x16xf32, #tpu.memory_space<vmem>>) attributes {dimension_semantics = [#tpu.dimension_semantics<parallel>], iteration_bounds = array<i64: 2>, scalar_prefetch = 0 : i64, scratch_operands = 0 : i64, tpu.core_type = #tpu.core_type<tc>, window_params = [{transform_indices = @transform_0, window_bounds = array<i64: 1, 16, 256>}, {pipeline_mode = #tpu.pipeline_mode<synchronous>, transform_indices = @transform_1, window_bounds = array<i64: 256, 16>}, {pipeline_mode = #tpu.pipeline_mode<synchronous>, transform_indices = @transform_2, window_bounds = array<i64: 12, 16>}, {transform_indices = @transform_3, window_bounds = array<i64: 1, 12, 16>}]} {
    %c0 = arith.constant 0 : index
    %c0_0 = arith.constant 0 : index
    %c0_1 = arith.constant 0 : index
    %0 = vector.load %arg1[%c0, %c0_0, %c0_1] : memref<1x16x256xf32, #tpu.memory_space<vmem>>, vector<1x16x256xf32>
    %1 = vector.shape_cast %0 : vector<1x16x256xf32> to vector<16x256xf32>
    %2 = arith.truncf %1 : vector<16x256xf32> to vector<16x256xbf16>
    %c0_2 = arith.constant 0 : index
    %c0_3 = arith.constant 0 : index
    %3 = vector.load %arg2[%c0_2, %c0_3] : memref<256x16xbf16, #tpu.memory_space<vmem>>, vector<256x16xbf16>
    %cst = arith.constant dense<0.000000e+00> : vector<16x16xf32>
    %4 = tpu.matmul %2, %3, %cst {dimension_numbers = #tpu.dot_dimension_numbers<[1], [0], [0], [1], [0, 0, 1, 1], [], []>} : vector<16x256xbf16>, vector<256x16xbf16>, vector<16x16xf32> -> vector<16x16xf32>
    %c0_4 = arith.constant 0 : index
    %c0_5 = arith.constant 0 : index
    %5 = vector.load %arg3[%c0_4, %c0_5] : memref<12x16xbf16, #tpu.memory_space<vmem>>, vector<12x16xbf16>
    %6 = arith.truncf %4 : vector<16x16xf32> to vector<16x16xbf16>
    %cst_6 = arith.constant dense<0.000000e+00> : vector<12x16xf32>
    %7 = tpu.matmul %5, %6, %cst_6 {dimension_numbers = #tpu.dot_dimension_numbers<[1], [0], [0], [1], [0, 0, 1, 1], [], []>} : vector<12x16xbf16>, vector<16x16xbf16>, vector<12x16xf32> -> vector<12x16xf32>
    %c0_7 = arith.constant 0 : index
    %c0_8 = arith.constant 0 : index
    %c0_9 = arith.constant 0 : index
    %8 = vector.load %arg4[%c0_7, %c0_8, %c0_9] : memref<1x12x16xf32, #tpu.memory_space<vmem>>, vector<1x12x16xf32>
    %9 = vector.shape_cast %8 : vector<1x12x16xf32> to vector<12x16xf32>
    %10 = vector.shape_cast %7 : vector<12x16xf32> to vector<1x12x16xf32>
    tpu.vector_store %arg4[%c0_7, %c0_8, %c0_9], %10 {strides = array<i32>} : memref<1x12x16xf32, #tpu.memory_space<vmem>>, vector<1x12x16xf32>,
    return
  }
  func.func @transform_0(%arg0: i32) -> (i32, i32, i32) {
    %c0_i32 = arith.constant 0 : i32
    %c0_i32_0 = arith.constant 0 : i32
    %c0_i32_1 = arith.constant 0 : i32
    return %arg0, %c0_i32, %c0_i32_0 : i32, i32, i32
  }
  func.func @transform_1(%arg0: i32) -> (i32, i32) {
    %c0_i32 = arith.constant 0 : i32
    %c0_i32_0 = arith.constant 0 : i32
    %c0_i32_1 = arith.constant 0 : i32
    return %c0_i32, %c0_i32_0 : i32, i32
  }
  func.func @transform_2(%arg0: i32) -> (i32, i32) {
    %c0_i32 = arith.constant 0 : i32
    %c0_i32_0 = arith.constant 0 : i32
    %c0_i32_1 = arith.constant 0 : i32
    return %c0_i32, %c0_i32_0 : i32, i32
  }
  func.func @transform_3(%arg0: i32) -> (i32, i32, i32) {
    %c0_i32 = arith.constant 0 : i32
    %c0_i32_0 = arith.constant 0 : i32
    %c0_i32_1 = arith.constant 0 : i32
    return %arg0, %c0_i32, %c0_i32_0 : i32, i32, i32
  }
}

module attributes {stable_mosaic.version = 11 : i64} {
  func.func @_bn_relu_up_kernel(%arg0: i32, %arg1: memref<1x12x16xf32, #tpu.memory_space<vmem>>, %arg2: memref<12x1xf32, #tpu.memory_space<vmem>>, %arg3: memref<12x1xf32, #tpu.memory_space<vmem>>, %arg4: memref<16x256xbf16, #tpu.memory_space<vmem>>, %arg5: memref<1x12x256xf32, #tpu.memory_space<vmem>>) attributes {dimension_semantics = [#tpu.dimension_semantics<parallel>], iteration_bounds = array<i64: 2>, scalar_prefetch = 0 : i64, scratch_operands = 0 : i64, tpu.core_type = #tpu.core_type<tc>, window_params = [{transform_indices = @transform_0, window_bounds = array<i64: 1, 12, 16>}, {pipeline_mode = #tpu.pipeline_mode<synchronous>, transform_indices = @transform_1, window_bounds = array<i64: 12, 1>}, {pipeline_mode = #tpu.pipeline_mode<synchronous>, transform_indices = @transform_2, window_bounds = array<i64: 12, 1>}, {pipeline_mode = #tpu.pipeline_mode<synchronous>, transform_indices = @transform_3, window_bounds = array<i64: 16, 256>}, {transform_indices = @transform_4, window_bounds = array<i64: 1, 12, 256>}]} {
    %c0 = arith.constant 0 : index
    %c0_0 = arith.constant 0 : index
    %c0_1 = arith.constant 0 : index
    %0 = vector.load %arg1[%c0, %c0_0, %c0_1] : memref<1x12x16xf32, #tpu.memory_space<vmem>>, vector<1x12x16xf32>
    %1 = vector.shape_cast %0 : vector<1x12x16xf32> to vector<12x16xf32>
    %c0_2 = arith.constant 0 : index
    %c0_3 = arith.constant 0 : index
    %2 = vector.load %arg2[%c0_2, %c0_3] : memref<12x1xf32, #tpu.memory_space<vmem>>, vector<12x1xf32>
    %3 = vector.broadcast %2 : vector<12x1xf32> to vector<12x16xf32>
    %4 = arith.mulf %1, %3 : vector<12x16xf32>
    %c0_4 = arith.constant 0 : index
    %c0_5 = arith.constant 0 : index
    %5 = vector.load %arg3[%c0_4, %c0_5] : memref<12x1xf32, #tpu.memory_space<vmem>>, vector<12x1xf32>
    %6 = vector.broadcast %5 : vector<12x1xf32> to vector<12x16xf32>
    %7 = arith.addf %4, %6 : vector<12x16xf32>
    %cst = arith.constant 0.000000e+00 : f32
    %8 = vector.broadcast %cst : f32 to vector<12x16xf32>
    %9 = arith.maximumf %7, %8 : vector<12x16xf32>
    %10 = arith.truncf %9 : vector<12x16xf32> to vector<12x16xbf16>
    %c0_6 = arith.constant 0 : index
    %c0_7 = arith.constant 0 : index
    %11 = vector.load %arg4[%c0_6, %c0_7] : memref<16x256xbf16, #tpu.memory_space<vmem>>, vector<16x256xbf16>
    %cst_8 = arith.constant dense<0.000000e+00> : vector<12x256xf32>
    %12 = tpu.matmul %10, %11, %cst_8 {dimension_numbers = #tpu.dot_dimension_numbers<[1], [0], [0], [1], [0, 0, 1, 1], [], []>} : vector<12x16xbf16>, vector<16x256xbf16>, vector<12x256xf32> -> vector<12x256xf32>
    %c0_9 = arith.constant 0 : index
    %c0_10 = arith.constant 0 : index
    %c0_11 = arith.constant 0 : index
    %13 = vector.load %arg5[%c0_9, %c0_10, %c0_11] : memref<1x12x256xf32, #tpu.memory_space<vmem>>, vector<1x12x256xf32>
    %14 = vector.shape_cast %13 : vector<1x12x256xf32> to vector<12x256xf32>
    %15 = vector.shape_cast %12 : vector<12x256xf32> to vector<1x12x256xf32>
    tpu.vector_store %arg5[%c0_9, %c0_10, %c0_11], %15 {strides = array<i32>} : memref<1x12x256xf32, #tpu.memory_space<vmem>>, vector<1x12x256xf32>,
    return
  }
  func.func @transform_0(%arg0: i32) -> (i32, i32, i32) {
    %c0_i32 = arith.constant 0 : i32
    %c0_i32_0 = arith.constant 0 : i32
    %c0_i32_1 = arith.constant 0 : i32
    return %arg0, %c0_i32, %c0_i32_0 : i32, i32, i32
  }
  func.func @transform_1(%arg0: i32) -> (i32, i32) {
    %c0_i32 = arith.constant 0 : i32
    %c0_i32_0 = arith.constant 0 : i32
    %c0_i32_1 = arith.constant 0 : i32
    return %c0_i32, %c0_i32_0 : i32, i32
  }
  func.func @transform_2(%arg0: i32) -> (i32, i32) {
    %c0_i32 = arith.constant 0 : i32
    %c0_i32_0 = arith.constant 0 : i32
    %c0_i32_1 = arith.constant 0 : i32
    return %c0_i32, %c0_i32_0 : i32, i32
  }
  func.func @transform_3(%arg0: i32) -> (i32, i32) {
    %c0_i32 = arith.constant 0 : i32
    %c0_i32_0 = arith.constant 0 : i32
    %c0_i32_1 = arith.constant 0 : i32
    return %c0_i32, %c0_i32_0 : i32, i32
  }
  func.func @transform_4(%arg0: i32) -> (i32, i32, i32) {
    %c0_i32 = arith.constant 0 : i32
    %c0_i32_0 = arith.constant 0 : i32
    %c0_i32_1 = arith.constant 0 : i32
    return %arg0, %c0_i32, %c0_i32_0 : i32, i32, i32
  }
}

module attributes {stable_mosaic.version = 11 : i64} {
  func.func @_bn_relu_up_kernel(%arg0: i32, %arg1: memref<1x8x64xf32, #tpu.memory_space<vmem>>, %arg2: memref<8x1xf32, #tpu.memory_space<vmem>>, %arg3: memref<8x1xf32, #tpu.memory_space<vmem>>, %arg4: memref<64x256xbf16, #tpu.memory_space<vmem>>, %arg5: memref<1x8x256xf32, #tpu.memory_space<vmem>>) attributes {dimension_semantics = [#tpu.dimension_semantics<parallel>], iteration_bounds = array<i64: 2>, scalar_prefetch = 0 : i64, scratch_operands = 0 : i64, tpu.core_type = #tpu.core_type<tc>, window_params = [{transform_indices = @transform_0, window_bounds = array<i64: 1, 8, 64>}, {pipeline_mode = #tpu.pipeline_mode<synchronous>, transform_indices = @transform_1, window_bounds = array<i64: 8, 1>}, {pipeline_mode = #tpu.pipeline_mode<synchronous>, transform_indices = @transform_2, window_bounds = array<i64: 8, 1>}, {pipeline_mode = #tpu.pipeline_mode<synchronous>, transform_indices = @transform_3, window_bounds = array<i64: 64, 256>}, {transform_indices = @transform_4, window_bounds = array<i64: 1, 8, 256>}]} {
    %c0 = arith.constant 0 : index
    %c0_0 = arith.constant 0 : index
    %c0_1 = arith.constant 0 : index
    %0 = vector.load %arg1[%c0, %c0_0, %c0_1] : memref<1x8x64xf32, #tpu.memory_space<vmem>>, vector<1x8x64xf32>
    %1 = vector.shape_cast %0 : vector<1x8x64xf32> to vector<8x64xf32>
    %c0_2 = arith.constant 0 : index
    %c0_3 = arith.constant 0 : index
    %2 = vector.load %arg2[%c0_2, %c0_3] : memref<8x1xf32, #tpu.memory_space<vmem>>, vector<8x1xf32>
    %3 = vector.broadcast %2 : vector<8x1xf32> to vector<8x64xf32>
    %4 = arith.mulf %1, %3 : vector<8x64xf32>
    %c0_4 = arith.constant 0 : index
    %c0_5 = arith.constant 0 : index
    %5 = vector.load %arg3[%c0_4, %c0_5] : memref<8x1xf32, #tpu.memory_space<vmem>>, vector<8x1xf32>
    %6 = vector.broadcast %5 : vector<8x1xf32> to vector<8x64xf32>
    %7 = arith.addf %4, %6 : vector<8x64xf32>
    %cst = arith.constant 0.000000e+00 : f32
    %8 = vector.broadcast %cst : f32 to vector<8x64xf32>
    %9 = arith.maximumf %7, %8 : vector<8x64xf32>
    %10 = arith.truncf %9 : vector<8x64xf32> to vector<8x64xbf16>
    %c0_6 = arith.constant 0 : index
    %c0_7 = arith.constant 0 : index
    %11 = vector.load %arg4[%c0_6, %c0_7] : memref<64x256xbf16, #tpu.memory_space<vmem>>, vector<64x256xbf16>
    %cst_8 = arith.constant dense<0.000000e+00> : vector<8x256xf32>
    %12 = tpu.matmul %10, %11, %cst_8 {dimension_numbers = #tpu.dot_dimension_numbers<[1], [0], [0], [1], [0, 0, 1, 1], [], []>} : vector<8x64xbf16>, vector<64x256xbf16>, vector<8x256xf32> -> vector<8x256xf32>
    %c0_9 = arith.constant 0 : index
    %c0_10 = arith.constant 0 : index
    %c0_11 = arith.constant 0 : index
    %13 = vector.load %arg5[%c0_9, %c0_10, %c0_11] : memref<1x8x256xf32, #tpu.memory_space<vmem>>, vector<1x8x256xf32>
    %14 = vector.shape_cast %13 : vector<1x8x256xf32> to vector<8x256xf32>
    %15 = vector.shape_cast %12 : vector<8x256xf32> to vector<1x8x256xf32>
    tpu.vector_store %arg5[%c0_9, %c0_10, %c0_11], %15 {strides = array<i32>} : memref<1x8x256xf32, #tpu.memory_space<vmem>>, vector<1x8x256xf32>,
    return
  }
  func.func @transform_0(%arg0: i32) -> (i32, i32, i32) {
    %c0_i32 = arith.constant 0 : i32
    %c0_i32_0 = arith.constant 0 : i32
    %c0_i32_1 = arith.constant 0 : i32
    return %arg0, %c0_i32, %c0_i32_0 : i32, i32, i32
  }
  func.func @transform_1(%arg0: i32) -> (i32, i32) {
    %c0_i32 = arith.constant 0 : i32
    %c0_i32_0 = arith.constant 0 : i32
    %c0_i32_1 = arith.constant 0 : i32
    return %c0_i32, %c0_i32_0 : i32, i32
  }
  func.func @transform_2(%arg0: i32) -> (i32, i32) {
    %c0_i32 = arith.constant 0 : i32
    %c0_i32_0 = arith.constant 0 : i32
    %c0_i32_1 = arith.constant 0 : i32
    return %c0_i32, %c0_i32_0 : i32, i32
  }
  func.func @transform_3(%arg0: i32) -> (i32, i32) {
    %c0_i32 = arith.constant 0 : i32
    %c0_i32_0 = arith.constant 0 : i32
    %c0_i32_1 = arith.constant 0 : i32
    return %c0_i32, %c0_i32_0 : i32, i32
  }
  func.func @transform_4(%arg0: i32) -> (i32, i32, i32) {
    %c0_i32 = arith.constant 0 : i32
    %c0_i32_0 = arith.constant 0 : i32
    %c0_i32_1 = arith.constant 0 : i32
    return %arg0, %c0_i32, %c0_i32_0 : i32, i32, i32
  }
}

</mosaic_0001>

<llo_original>
// kernel: _forward_impl.6
$region0: #{_forward_impl.6}
  #allocation0 [shape = 'u32[]', space=smem, size = 0x4, offset = 0x4, fixed_abs, tag = 'smem constant byte address 0x4 - core index']
  #allocation1 [shape = 'u32[144,128]{1,0:T(1,128)}', space=vmem, size = 0x12000, scoped, tag = 'internal scratch']
  %s0 = inlined_call_operand.vmem [shape: f32[2,28,256], index: 0, kind: input, shape index: {}]
  %s1 = inlined_call_operand.vmem [shape: bf16[4,8], index: 1, kind: input, shape index: {}]
  %s2 = inlined_call_operand.vmem [shape: f32[2,4,256], index: 2, kind: output, shape index: {}]
  %s3 = sld [smem:[#allocation0]]
  $region41: #{_forward_impl.6} parent=0
    _
  %s5 = ssub.s32 1, %s3
  %s6 = scalar_select 0, %s5, %s3
  loop: start=0, step=1, limit=4
  $region2: #{_forward_impl.6} parent=0 // loop_pre_header
    _
  $region3: #{_forward_impl.6} parent=0 // loop_header
    %s8 = sphi 0, %s12
    %p9 = scmp.ge.s32.totalorder %s8, 4
    %s18 = sphi 0, %s20
    %s21 = sphi 0, %s18
    %s22 = sphi 0, %s21
    %s38 = sphi 0, %s22
    %s42 = sphi 0, %s42
    %s44 = sphi 0, %s42
    %s45 = sphi 0, %s44
    %s59 = sphi 0, %s45
    %s65 = sphi 0, %s67
    %s68 = sphi 0, %s65
    %s69 = sphi 0, %s68
    %s85 = sphi 0, %s69
  $region4: #{_forward_impl.6} parent=0 // loop_header_branch
    %11 = sbr.rel (%p9) target = $region8
  $region5: #{_forward_impl.6} parent=0 // loop_body
    %s13 = ssub.s32 %s8, 1
    %s14 = ssub.s32 %s8, 2
    %s15 = sadd.s32 %s8, 1
    %s16 = ssub.s32 %s8, %s15
    %p17 = scmp.eq.s32.totalorder %s16, 0
    %s19 = sadd.s32 %s18, 1
    %s20 = scalar_select %p17, %s18, %s19
    %p23 = pneg %p17
    %p24 = scmp.eq.s32.totalorder %s8, 1
    %p25 = por %p23, %p24
    %p26 = scmp.ne.s32.totalorder %s18, %s21
    %p27 = scmp.eq.s32.totalorder %s8, 0
    %p28 = por %p26, %p27
    %p29 = scmp.ne.s32.totalorder %s18, %s21
    %p30 = scmp.eq.s32.totalorder %s13, 1
    %p31 = por %p29, %p30
    %p32 = scmp.ne.s32.totalorder %s21, %s22
    %p33 = scmp.eq.s32.totalorder %s13, 0
    %p34 = por %p32, %p33
    %p35 = scmp.ne.s32.totalorder %s21, %s22
    %p36 = scmp.eq.s32.totalorder %s14, 1
    %p37 = por %p35, %p36
    %p39 = scmp.ne.s32.totalorder %s22, %s38
    %p40 = scmp.eq.s32.totalorder %s14, 0
    %p41 = por %p39, %p40
    %s43 = sadd.s32 %s42, 1
    %p46 = scmp.eq.s32.totalorder %s8, 1
    %p47 = scmp.ne.s32.totalorder %s42, %s44
    %p48 = scmp.eq.s32.totalorder %s8, 0
    %p49 = por %p47, %p48
    %p50 = scmp.ne.s32.totalorder %s42, %s44
    %p51 = scmp.eq.s32.totalorder %s13, 1
    %p52 = por %p50, %p51
    %p53 = scmp.ne.s32.totalorder %s44, %s45
    %p54 = scmp.eq.s32.totalorder %s13, 0
    %p55 = por %p53, %p54
    %p56 = scmp.ne.s32.totalorder %s44, %s45
    %p57 = scmp.eq.s32.totalorder %s14, 1
    %p58 = por %p56, %p57
    %p60 = scmp.ne.s32.totalorder %s45, %s59
    %p61 = scmp.eq.s32.totalorder %s14, 0
    %p62 = por %p60, %p61
    %s63 = ssub.s32 %s8, %s15
    %p64 = scmp.eq.s32.totalorder %s63, 0
    %s66 = sadd.s32 %s65, 1
    %s67 = scalar_select %p64, %s65, %s66
    %p70 = pneg %p64
    %p71 = scmp.eq.s32.totalorder %s8, 1
    %p72 = por %p70, %p71
    %p73 = scmp.ne.s32.totalorder %s65, %s68
    %p74 = scmp.eq.s32.totalorder %s8, 0
    %p75 = por %p73, %p74
    %p76 = scmp.ne.s32.totalorder %s65, %s68
    %p77 = scmp.eq.s32.totalorder %s13, 1
    %p78 = por %p76, %p77
    %p79 = scmp.ne.s32.totalorder %s68, %s69
    %p80 = scmp.eq.s32.totalorder %s13, 0
    %p81 = por %p79, %p80
    %p82 = scmp.ne.s32.totalorder %s68, %s69
    %p83 = scmp.eq.s32.totalorder %s14, 1
    %p84 = por %p82, %p83
    %p86 = scmp.ne.s32.totalorder %s69, %s85
    %p87 = scmp.eq.s32.totalorder %s14, 0
    %p88 = por %p86, %p87
    %p89 = scmp.le.s32.totalorder 1, %s8
    %p90 = scmp.lt.s32.totalorder %s8, 3
    %p91 = pnand %p89, %p90
    %p92 = pneg %p91
    // Predicated region
    $region9: #{_forward_impl.6} parent=5 // pred_check
      _
    $region10: #{_forward_impl.6} parent=5 // pred_check_branch
      %94 = sbr.rel (%p91) target = $region12
    $region11: #{_forward_impl.6} parent=5 // pred_region
      %s95 = ssub.s32 %s8, 1
      // Predicated region
      $region13: #{_forward_impl.6} parent=11 // pred_check
        %p96 = pneg %p55
      $region14: #{_forward_impl.6} parent=11 // pred_check_branch
        %98 = sbr.rel (%p96) target = $region16
      $region15: #{_forward_impl.6} parent=11 // pred_region
        _
      $region16: #{_forward_impl.6} parent=11 // pred_fallthru
        _
    $region12: #{_forward_impl.6} parent=5 // pred_fallthru
      _
    %p99 = scmp.lt.s32.totalorder %s8, 2
    // Predicated region
    $region17: #{_forward_impl.6} parent=5 // pred_check
      %p100 = pneg %p99
    $region18: #{_forward_impl.6} parent=5 // pred_check_branch
      %102 = sbr.rel (%p100) target = $region20
    $region19: #{_forward_impl.6} parent=5 // pred_region
      // Predicated region
      $region21: #{_forward_impl.6} parent=19 // pred_check
        %p103 = pneg %p28
      $region22: #{_forward_impl.6} parent=19 // pred_check_branch
        %105 = sbr.rel (%p103) target = $region24
      $region23: #{_forward_impl.6} parent=19 // pred_region
        %p106 = scmp.lt.s32.totalorder %s8, 1
        %s107 = scalar_select %p106, %s8, 1
        %s108 = smul.addr %s107, 8
        %s109 = smul.addr %s108, 8
        %s110 = scalar_lea.vmem %s0, %s109
      $region24: #{_forward_impl.6} parent=19 // pred_fallthru
        _
    $region20: #{_forward_impl.6} parent=5 // pred_fallthru
      _
    %p111 = scmp.le.s32.totalorder 1, %s8
    %p112 = scmp.lt.s32.totalorder %s8, 3
    %p113 = pnand %p111, %p112
    %p114 = pneg %p113
    // Predicated region
    $region25: #{_forward_impl.6} parent=5 // pred_check
      _
    $region26: #{_forward_impl.6} parent=5 // pred_check_branch
      %116 = sbr.rel (%p113) target = $region28
    $region27: #{_forward_impl.6} parent=5 // pred_region
      %s117 = ssub.s32 %s8, 1
      %p118 = scmp.lt.s32.totalorder %s13, 1
      %s119 = scalar_select %p118, %s13, 1
      %s120 = smul.addr %s119, 8
      %s121 = smul.addr %s120, 8
      %s122 = scalar_lea.vmem %s0, %s121
      %p123 = pneg %p34
      %p124 = pneg %p31
      %p125 = pneg %p55
      %p126 = pneg %p52
      %p127 = pneg %p81
      %p128 = pneg %p78
      %p129 = scmp.lt.s32.totalorder %s13, 1
      %s130 = scalar_select %p129, %s13, 1
      %s131 = smul.addr %s130, 2
      %s132 = smul.addr %s131, 4
      %s133 = scalar_lea.vmem %s2, %s132
      %p134 = scmp.lt.s32.totalorder %s13, 1
      %s135 = scalar_select %p134, %s13, 1
      %s136 = smul.addr %s135, 8
      %s137 = smul.addr %s136, 8
      %s138 = scalar_lea.vmem %s0, %s137
      %p139 = scmp.lt.s32.totalorder %s13, 1
      %s140 = scalar_select %p139, %s13, 1
      %s141 = smul.addr %s140, 2
      %s142 = smul.addr %s141, 4
      %s143 = scalar_lea.vmem %s2, %s142
      %v145 = vld [vmem:[%s138] sm:$0xff]
      %v146 = vld [vmem:[%s138 + $0x8] sm:$0xff]
      %v147 = vpack.c.bf16 %v145, %v145
      %v148 = vpack.c.bf16 %v146, %v146
      %v149 = vld [vmem:[%s1] sm:$0x3]
      %vm150 = vcmask 64512
      %v152 = vsel %vm150, %v149, 0
      %vm154 = vcmask 1043456
      %v156 = vsel %vm154, %v147, 0
      %v159 = vsel %vm154, %v148, 0
      %161 = vmatprep.subr.bf16.mxu0 0
      %162 = vmatpush1.bf16.msra.mxu0 0
      %163 = vmatprep.subr.bf16.mxu0 0
      %164 = vmatpush1.bf16.msra.mxu0 0
      %165 = vmatprep.subr.bf16.mxu0 0
      %166 = vmatpush1.bf16.msra.mxu0 0
      %167 = vmatprep.subr.bf16.mxu0 0
      %168 = vmatpush1.bf16.msra.mxu0 0
      %169 = vmatprep.subr.bf16.mxu0 0
      %170 = vmatpush1.bf16.msra.mxu0 0
      %171 = vmatprep.subr.bf16.mxu0 0
      %172 = vmatpush1.bf16.msra.mxu0 0
      %173 = vmatprep.subr.bf16.mxu0 0
      %174 = vmatpush1.bf16.msra.mxu0 0
      %175 = vmatprep.subr.bf16.mxu0 %v159
      %176 = vmatpush1.bf16.msra.mxu0 %v156
      %177 = vmatprep.subr.bf16.mxu0 0
      %178 = vmatpush2.bf16.msra.mxu0 0
      %179 = vmatprep.subr.bf16.mxu0 0
      %180 = vmatpush2.bf16.msra.mxu0 0
      %181 = vmatprep.subr.bf16.mxu0 0
      %182 = vmatpush2.bf16.msra.mxu0 0
      %183 = vmatprep.subr.bf16.mxu0 0
      %184 = vmatpush2.bf16.msra.mxu0 0
      %185 = vmatprep.subr.bf16.mxu0 0
      %186 = vmatpush2.bf16.msra.mxu0 0
      %187 = vmatprep.subr.bf16.mxu0 0
      %188 = vmatpush2.bf16.msra.mxu0 0
      %189 = vmatprep.subr.bf16.mxu0 0
      %190 = vmatpush2.bf16.msra.mxu0 0
      %191 = vmatprep.subr.bf16.mxu0 0
      %192 = vmatpush2.bf16.msra.mxu0 0
      %193 = vmatprep.mubr.bf16.mxu0 0
      %194 = vmatmul.mubr.bf16.gmra.mxu0 %v152
      %v195 = vpop.f32.mrf.mxu0
      %v196 = vadd.f32 0.0, %v195
      %v197 = vpop.f32.mrf.mxu0
      %v198 = vadd.f32 0.0, %v197
      %v199 = vpop.f32.mrf.mxu0
      %v200 = vpop.f32.mrf.mxu0
      %201 = vdwg.mxu0
      %v204 = vcombine.low %v196, %v198
      %206 = vst [vmem:[%s143] sm:$0xff] %v204
      %p207 = scmp.lt.s32.totalorder %s13, 1
      %s208 = scalar_select %p207, %s13, 1
      %s209 = smul.addr %s208, 2
      %s210 = smul.addr %s209, 4
      %s211 = scalar_lea.vmem %s2, %s210
      // Predicated region
      $region29: #{_forward_impl.6} parent=27 // pred_check
        %p212 = pneg %p78
      $region30: #{_forward_impl.6} parent=27 // pred_check_branch
        %214 = sbr.rel (%p212) target = $region32
      $region31: #{_forward_impl.6} parent=27 // pred_region
        _
      $region32: #{_forward_impl.6} parent=27 // pred_fallthru
        _
    $region28: #{_forward_impl.6} parent=5 // pred_fallthru
      _
    %p215 = scmp.le.s32.totalorder 2, %s8
    // Predicated region
    $region33: #{_forward_impl.6} parent=5 // pred_check
      %p216 = pneg %p215
    $region34: #{_forward_impl.6} parent=5 // pred_check_branch
      %218 = sbr.rel (%p216) target = $region36
    $region35: #{_forward_impl.6} parent=5 // pred_region
      %s219 = ssub.s32 %s8, 2
      // Predicated region
      $region37: #{_forward_impl.6} parent=35 // pred_check
        %p220 = pneg %p84
      $region38: #{_forward_impl.6} parent=35 // pred_check_branch
        %222 = sbr.rel (%p220) target = $region40
      $region39: #{_forward_impl.6} parent=35 // pred_region
        %p223 = scmp.lt.s32.totalorder %s14, 1
        %s224 = scalar_select %p223, %s14, 1
        %s225 = smul.addr %s224, 2
        %s226 = smul.addr %s225, 4
        %s227 = scalar_lea.vmem %s2, %s226
      $region40: #{_forward_impl.6} parent=35 // pred_fallthru
        _
    $region36: #{_forward_impl.6} parent=5 // pred_fallthru
      _
  $region6: #{_forward_impl.6} parent=0 // loop_footer
    %s12 = sadd.s32 1, %s8
  $region7: #{_forward_impl.6} parent=0 // loop_footer_branch
    %7 = sbr.rel target = $region3
  $region8: #{_forward_impl.6} parent=0 // loop_exit
    _

// kernel: _forward_impl.7
$region0: #{_forward_impl.7}
  #allocation0 [shape = 'u32[]', space=smem, size = 0x4, offset = 0x4, fixed_abs, tag = 'smem constant byte address 0x4 - core index']
  #allocation1 [shape = 'u32[144,128]{1,0:T(1,128)}', space=vmem, size = 0x12000, scoped, tag = 'internal scratch']
  %s0 = inlined_call_operand.vmem [shape: f32[2,4,256], index: 0, kind: input, shape index: {}]
  %s1 = inlined_call_operand.vmem [shape: f32[4,1], index: 1, kind: input, shape index: {}]
  %s2 = inlined_call_operand.vmem [shape: f32[4,1], index: 2, kind: input, shape index: {}]
  %s3 = inlined_call_operand.vmem [shape: f32[2,4,256], index: 3, kind: output, shape index: {}]
  %s4 = sld [smem:[#allocation0]]
  $region45: #{_forward_impl.7} parent=0
    _
  %s6 = ssub.s32 1, %s4
  %s7 = scalar_select 0, %s6, %s4
  loop: start=0, step=1, limit=4
  $region2: #{_forward_impl.7} parent=0 // loop_pre_header
    _
  $region3: #{_forward_impl.7} parent=0 // loop_header
    %s9 = sphi 0, %s13
    %p10 = scmp.ge.s32.totalorder %s9, 4
    %s19 = sphi 0, %s21
    %s22 = sphi 0, %s19
    %s23 = sphi 0, %s22
    %s39 = sphi 0, %s23
    %s43 = sphi 0, %s43
    %s45 = sphi 0, %s43
    %s46 = sphi 0, %s45
    %s60 = sphi 0, %s46
    %s64 = sphi 0, %s64
    %s66 = sphi 0, %s64
    %s67 = sphi 0, %s66
    %s81 = sphi 0, %s67
    %s87 = sphi 0, %s89
    %s90 = sphi 0, %s87
    %s91 = sphi 0, %s90
    %s107 = sphi 0, %s91
  $region4: #{_forward_impl.7} parent=0 // loop_header_branch
    %12 = sbr.rel (%p10) target = $region8
  $region5: #{_forward_impl.7} parent=0 // loop_body
    %s14 = ssub.s32 %s9, 1
    %s15 = ssub.s32 %s9, 2
    %s16 = sadd.s32 %s9, 1
    %s17 = ssub.s32 %s9, %s16
    %p18 = scmp.eq.s32.totalorder %s17, 0
    %s20 = sadd.s32 %s19, 1
    %s21 = scalar_select %p18, %s19, %s20
    %p24 = pneg %p18
    %p25 = scmp.eq.s32.totalorder %s9, 1
    %p26 = por %p24, %p25
    %p27 = scmp.ne.s32.totalorder %s19, %s22
    %p28 = scmp.eq.s32.totalorder %s9, 0
    %p29 = por %p27, %p28
    %p30 = scmp.ne.s32.totalorder %s19, %s22
    %p31 = scmp.eq.s32.totalorder %s14, 1
    %p32 = por %p30, %p31
    %p33 = scmp.ne.s32.totalorder %s22, %s23
    %p34 = scmp.eq.s32.totalorder %s14, 0
    %p35 = por %p33, %p34
    %p36 = scmp.ne.s32.totalorder %s22, %s23
    %p37 = scmp.eq.s32.totalorder %s15, 1
    %p38 = por %p36, %p37
    %p40 = scmp.ne.s32.totalorder %s23, %s39
    %p41 = scmp.eq.s32.totalorder %s15, 0
    %p42 = por %p40, %p41
    %s44 = sadd.s32 %s43, 1
    %p47 = scmp.eq.s32.totalorder %s9, 1
    %p48 = scmp.ne.s32.totalorder %s43, %s45
    %p49 = scmp.eq.s32.totalorder %s9, 0
    %p50 = por %p48, %p49
    %p51 = scmp.ne.s32.totalorder %s43, %s45
    %p52 = scmp.eq.s32.totalorder %s14, 1
    %p53 = por %p51, %p52
    %p54 = scmp.ne.s32.totalorder %s45, %s46
    %p55 = scmp.eq.s32.totalorder %s14, 0
    %p56 = por %p54, %p55
    %p57 = scmp.ne.s32.totalorder %s45, %s46
    %p58 = scmp.eq.s32.totalorder %s15, 1
    %p59 = por %p57, %p58
    %p61 = scmp.ne.s32.totalorder %s46, %s60
    %p62 = scmp.eq.s32.totalorder %s15, 0
    %p63 = por %p61, %p62
    %s65 = sadd.s32 %s64, 1
    %p68 = scmp.eq.s32.totalorder %s9, 1
    %p69 = scmp.ne.s32.totalorder %s64, %s66
    %p70 = scmp.eq.s32.totalorder %s9, 0
    %p71 = por %p69, %p70
    %p72 = scmp.ne.s32.totalorder %s64, %s66
    %p73 = scmp.eq.s32.totalorder %s14, 1
    %p74 = por %p72, %p73
    %p75 = scmp.ne.s32.totalorder %s66, %s67
    %p76 = scmp.eq.s32.totalorder %s14, 0
    %p77 = por %p75, %p76
    %p78 = scmp.ne.s32.totalorder %s66, %s67
    %p79 = scmp.eq.s32.totalorder %s15, 1
    %p80 = por %p78, %p79
    %p82 = scmp.ne.s32.totalorder %s67, %s81
    %p83 = scmp.eq.s32.totalorder %s15, 0
    %p84 = por %p82, %p83
    %s85 = ssub.s32 %s9, %s16
    %p86 = scmp.eq.s32.totalorder %s85, 0
    %s88 = sadd.s32 %s87, 1
    %s89 = scalar_select %p86, %s87, %s88
    %p92 = pneg %p86
    %p93 = scmp.eq.s32.totalorder %s9, 1
    %p94 = por %p92, %p93
    %p95 = scmp.ne.s32.totalorder %s87, %s90
    %p96 = scmp.eq.s32.totalorder %s9, 0
    %p97 = por %p95, %p96
    %p98 = scmp.ne.s32.totalorder %s87, %s90
    %p99 = scmp.eq.s32.totalorder %s14, 1
    %p100 = por %p98, %p99
    %p101 = scmp.ne.s32.totalorder %s90, %s91
    %p102 = scmp.eq.s32.totalorder %s14, 0
    %p103 = por %p101, %p102
    %p104 = scmp.ne.s32.totalorder %s90, %s91
    %p105 = scmp.eq.s32.totalorder %s15, 1
    %p106 = por %p104, %p105
    %p108 = scmp.ne.s32.totalorder %s91, %s107
    %p109 = scmp.eq.s32.totalorder %s15, 0
    %p110 = por %p108, %p109
    %p111 = scmp.le.s32.totalorder 1, %s9
    %p112 = scmp.lt.s32.totalorder %s9, 3
    %p113 = pnand %p111, %p112
    %p114 = pneg %p113
    // Predicated region
    $region9: #{_forward_impl.7} parent=5 // pred_check
      _
    $region10: #{_forward_impl.7} parent=5 // pred_check_branch
      %116 = sbr.rel (%p113) target = $region12
    $region11: #{_forward_impl.7} parent=5 // pred_region
      %s117 = ssub.s32 %s9, 1
      // Predicated region
      $region13: #{_forward_impl.7} parent=11 // pred_check
        %p118 = pneg %p56
      $region14: #{_forward_impl.7} parent=11 // pred_check_branch
        %120 = sbr.rel (%p118) target = $region16
      $region15: #{_forward_impl.7} parent=11 // pred_region
        _
      $region16: #{_forward_impl.7} parent=11 // pred_fallthru
        _
      // Predicated region
      $region17: #{_forward_impl.7} parent=11 // pred_check
        %p121 = pneg %p77
      $region18: #{_forward_impl.7} parent=11 // pred_check_branch
        %123 = sbr.rel (%p121) target = $region20
      $region19: #{_forward_impl.7} parent=11 // pred_region
        _
      $region20: #{_forward_impl.7} parent=11 // pred_fallthru
        _
    $region12: #{_forward_impl.7} parent=5 // pred_fallthru
      _
    %p124 = scmp.lt.s32.totalorder %s9, 2
    // Predicated region
    $region21: #{_forward_impl.7} parent=5 // pred_check
      %p125 = pneg %p124
    $region22: #{_forward_impl.7} parent=5 // pred_check_branch
      %127 = sbr.rel (%p125) target = $region24
    $region23: #{_forward_impl.7} parent=5 // pred_region
      // Predicated region
      $region25: #{_forward_impl.7} parent=23 // pred_check
        %p128 = pneg %p29
      $region26: #{_forward_impl.7} parent=23 // pred_check_branch
        %130 = sbr.rel (%p128) target = $region28
      $region27: #{_forward_impl.7} parent=23 // pred_region
        %p131 = scmp.lt.s32.totalorder %s9, 1
        %s132 = scalar_select %p131, %s9, 1
        %s133 = smul.addr %s132, 2
        %s134 = smul.addr %s133, 4
        %s135 = scalar_lea.vmem %s0, %s134
      $region28: #{_forward_impl.7} parent=23 // pred_fallthru
        _
    $region24: #{_forward_impl.7} parent=5 // pred_fallthru
      _
    %p136 = scmp.le.s32.totalorder 1, %s9
    %p137 = scmp.lt.s32.totalorder %s9, 3
    %p138 = pnand %p136, %p137
    %p139 = pneg %p138
    // Predicated region
    $region29: #{_forward_impl.7} parent=5 // pred_check
      _
    $region30: #{_forward_impl.7} parent=5 // pred_check_branch
      %141 = sbr.rel (%p138) target = $region32
    $region31: #{_forward_impl.7} parent=5 // pred_region
      %s142 = ssub.s32 %s9, 1
      %p143 = scmp.lt.s32.totalorder %s14, 1
      %s144 = scalar_select %p143, %s14, 1
      %s145 = smul.addr %s144, 2
      %s146 = smul.addr %s145, 4
      %s147 = scalar_lea.vmem %s0, %s146
      %p148 = pneg %p35
      %p149 = pneg %p32
      %p150 = pneg %p56
      %p151 = pneg %p53
      %p152 = pneg %p77
      %p153 = pneg %p74
      %p154 = pneg %p103
      %p155 = pneg %p100
      %p156 = scmp.lt.s32.totalorder %s14, 1
      %s157 = scalar_select %p156, %s14, 1
      %s158 = smul.addr %s157, 2
      %s159 = smul.addr %s158, 4
      %s160 = scalar_lea.vmem %s3, %s159
      %p161 = scmp.lt.s32.totalorder %s14, 1
      %s162 = scalar_select %p161, %s14, 1
      %s163 = smul.addr %s162, 2
      %s164 = smul.addr %s163, 4
      %s165 = scalar_lea.vmem %s0, %s164
      %p166 = scmp.lt.s32.totalorder %s14, 1
      %s167 = scalar_select %p166, %s14, 1
      %s168 = smul.addr %s167, 2
      %s169 = smul.addr %s168, 4
      %s170 = scalar_lea.vmem %s3, %s169
      %v171 = vld [vmem:[%s165] sm:$0xff]
      %v172 = vld [vmem:[%s1] sm:$0xf]
      %174 = vset.pattern.permute.xlu0 0
      %175 = vperm.xlu0 %174, %v172
      %v176 = vpop.permute.xlu0 %175
      %v178 = vunpack.c.l.s4 839922192
      %v179 = vunpack.c.0.s8 %v178
      %v180 = vlaneseq
      %v181 = vshrl.u32 %v180, 7
      %v182 = vsub.s32 %v179, %v181
      %v183 = vrot.slane %v176, %v182
      %v185 = vmul.f32 %v171, %v183
      %v186 = vld [vmem:[%s2] sm:$0xf]
      %188 = vset.pattern.permute.xlu0 0
      %189 = vperm.xlu0 %188, %v186
      %v190 = vpop.permute.xlu0 %189
      %v192 = vunpack.c.l.s4 839922192
      %v193 = vunpack.c.0.s8 %v192
      %v194 = vlaneseq
      %v195 = vshrl.u32 %v194, 7
      %v196 = vsub.s32 %v193, %v195
      %v197 = vrot.slane %v190, %v196
      %v199 = vadd.f32 %v185, %v197
      %v200 = vmax.f32 %v199, 0.0
      %201 = vst [vmem:[%s170] sm:$0xff] %v200
      %p202 = scmp.lt.s32.totalorder %s14, 1
      %s203 = scalar_select %p202, %s14, 1
      %s204 = smul.addr %s203, 2
      %s205 = smul.addr %s204, 4
      %s206 = scalar_lea.vmem %s3, %s205
      // Predicated region
      $region33: #{_forward_impl.7} parent=31 // pred_check
        %p207 = pneg %p100
      $region34: #{_forward_impl.7} parent=31 // pred_check_branch
        %209 = sbr.rel (%p207) target = $region36
      $region35: #{_forward_impl.7} parent=31 // pred_region
        _
      $region36: #{_forward_impl.7} parent=31 // pred_fallthru
        _
    $region32: #{_forward_impl.7} parent=5 // pred_fallthru
      _
    %p210 = scmp.le.s32.totalorder 2, %s9
    // Predicated region
    $region37: #{_forward_impl.7} parent=5 // pred_check
      %p211 = pneg %p210
    $region38: #{_forward_impl.7} parent=5 // pred_check_branch
      %213 = sbr.rel (%p211) target = $region40
    $region39: #{_forward_impl.7} parent=5 // pred_region
      %s214 = ssub.s32 %s9, 2
      // Predicated region
      $region41: #{_forward_impl.7} parent=39 // pred_check
        %p215 = pneg %p106
      $region42: #{_forward_impl.7} parent=39 // pred_check_branch
        %217 = sbr.rel (%p215) target = $region44
      $region43: #{_forward_impl.7} parent=39 // pred_region
        %p218 = scmp.lt.s32.totalorder %s15, 1
        %s219 = scalar_select %p218, %s15, 1
        %s220 = smul.addr %s219, 2
        %s221 = smul.addr %s220, 4
        %s222 = scalar_lea.vmem %s3, %s221
      $region44: #{_forward_impl.7} parent=39 // pred_fallthru
        _
    $region40: #{_forward_impl.7} parent=5 // pred_fallthru
      _
  $region6: #{_forward_impl.7} parent=0 // loop_footer
    %s13 = sadd.s32 1, %s9
  $region7: #{_forward_impl.7} parent=0 // loop_footer_branch
    %8 = sbr.rel target = $region3
  $region8: #{_forward_impl.7} parent=0 // loop_exit
    _

// kernel: _forward_impl.8
$region0: #{_forward_impl.8}
  #allocation0 [shape = 'u32[]', space=smem, size = 0x4, offset = 0x4, fixed_abs, tag = 'smem constant byte address 0x4 - core index']
  #allocation1 [shape = 'u32[144,128]{1,0:T(1,128)}', space=vmem, size = 0x12000, scoped, tag = 'internal scratch']
  %s0 = inlined_call_operand.vmem [shape: f32[2,28,256], index: 0, kind: input, shape index: {}]
  %s1 = inlined_call_operand.vmem [shape: bf16[256,64], index: 1, kind: input, shape index: {}]
  %s2 = inlined_call_operand.vmem [shape: bf16[8,8], index: 2, kind: input, shape index: {}]
  %s3 = inlined_call_operand.vmem [shape: f32[2,8,64], index: 3, kind: output, shape index: {}]
  %s4 = sld [smem:[#allocation0]]
  $region45: #{_forward_impl.8} parent=0
    _
  %s6 = ssub.s32 1, %s4
  %s7 = scalar_select 0, %s6, %s4
  loop: start=0, step=1, limit=4
  $region2: #{_forward_impl.8} parent=0 // loop_pre_header
    _
  $region3: #{_forward_impl.8} parent=0 // loop_header
    %s9 = sphi 0, %s13
    %p10 = scmp.ge.s32.totalorder %s9, 4
    %s19 = sphi 0, %s21
    %s22 = sphi 0, %s19
    %s23 = sphi 0, %s22
    %s39 = sphi 0, %s23
    %s43 = sphi 0, %s43
    %s45 = sphi 0, %s43
    %s46 = sphi 0, %s45
    %s60 = sphi 0, %s46
    %s64 = sphi 0, %s64
    %s66 = sphi 0, %s64
    %s67 = sphi 0, %s66
    %s81 = sphi 0, %s67
    %s87 = sphi 0, %s89
    %s90 = sphi 0, %s87
    %s91 = sphi 0, %s90
    %s107 = sphi 0, %s91
  $region4: #{_forward_impl.8} parent=0 // loop_header_branch
    %12 = sbr.rel (%p10) target = $region8
  $region5: #{_forward_impl.8} parent=0 // loop_body
    %s14 = ssub.s32 %s9, 1
    %s15 = ssub.s32 %s9, 2
    %s16 = sadd.s32 %s9, 1
    %s17 = ssub.s32 %s9, %s16
    %p18 = scmp.eq.s32.totalorder %s17, 0
    %s20 = sadd.s32 %s19, 1
    %s21 = scalar_select %p18, %s19, %s20
    %p24 = pneg %p18
    %p25 = scmp.eq.s32.totalorder %s9, 1
    %p26 = por %p24, %p25
    %p27 = scmp.ne.s32.totalorder %s19, %s22
    %p28 = scmp.eq.s32.totalorder %s9, 0
    %p29 = por %p27, %p28
    %p30 = scmp.ne.s32.totalorder %s19, %s22
    %p31 = scmp.eq.s32.totalorder %s14, 1
    %p32 = por %p30, %p31
    %p33 = scmp.ne.s32.totalorder %s22, %s23
    %p34 = scmp.eq.s32.totalorder %s14, 0
    %p35 = por %p33, %p34
    %p36 = scmp.ne.s32.totalorder %s22, %s23
    %p37 = scmp.eq.s32.totalorder %s15, 1
    %p38 = por %p36, %p37
    %p40 = scmp.ne.s32.totalorder %s23, %s39
    %p41 = scmp.eq.s32.totalorder %s15, 0
    %p42 = por %p40, %p41
    %s44 = sadd.s32 %s43, 1
    %p47 = scmp.eq.s32.totalorder %s9, 1
    %p48 = scmp.ne.s32.totalorder %s43, %s45
    %p49 = scmp.eq.s32.totalorder %s9, 0
    %p50 = por %p48, %p49
    %p51 = scmp.ne.s32.totalorder %s43, %s45
    %p52 = scmp.eq.s32.totalorder %s14, 1
    %p53 = por %p51, %p52
    %p54 = scmp.ne.s32.totalorder %s45, %s46
    %p55 = scmp.eq.s32.totalorder %s14, 0
    %p56 = por %p54, %p55
    %p57 = scmp.ne.s32.totalorder %s45, %s46
    %p58 = scmp.eq.s32.totalorder %s15, 1
    %p59 = por %p57, %p58
    %p61 = scmp.ne.s32.totalorder %s46, %s60
    %p62 = scmp.eq.s32.totalorder %s15, 0
    %p63 = por %p61, %p62
    %s65 = sadd.s32 %s64, 1
    %p68 = scmp.eq.s32.totalorder %s9, 1
    %p69 = scmp.ne.s32.totalorder %s64, %s66
    %p70 = scmp.eq.s32.totalorder %s9, 0
    %p71 = por %p69, %p70
    %p72 = scmp.ne.s32.totalorder %s64, %s66
    %p73 = scmp.eq.s32.totalorder %s14, 1
    %p74 = por %p72, %p73
    %p75 = scmp.ne.s32.totalorder %s66, %s67
    %p76 = scmp.eq.s32.totalorder %s14, 0
    %p77 = por %p75, %p76
    %p78 = scmp.ne.s32.totalorder %s66, %s67
    %p79 = scmp.eq.s32.totalorder %s15, 1
    %p80 = por %p78, %p79
    %p82 = scmp.ne.s32.totalorder %s67, %s81
    %p83 = scmp.eq.s32.totalorder %s15, 0
    %p84 = por %p82, %p83
    %s85 = ssub.s32 %s9, %s16
    %p86 = scmp.eq.s32.totalorder %s85, 0
    %s88 = sadd.s32 %s87, 1
    %s89 = scalar_select %p86, %s87, %s88
    %p92 = pneg %p86
    %p93 = scmp.eq.s32.totalorder %s9, 1
    %p94 = por %p92, %p93
    %p95 = scmp.ne.s32.totalorder %s87, %s90
    %p96 = scmp.eq.s32.totalorder %s9, 0
    %p97 = por %p95, %p96
    %p98 = scmp.ne.s32.totalorder %s87, %s90
    %p99 = scmp.eq.s32.totalorder %s14, 1
    %p100 = por %p98, %p99
    %p101 = scmp.ne.s32.totalorder %s90, %s91
    %p102 = scmp.eq.s32.totalorder %s14, 0
    %p103 = por %p101, %p102
    %p104 = scmp.ne.s32.totalorder %s90, %s91
    %p105 = scmp.eq.s32.totalorder %s15, 1
    %p106 = por %p104, %p105
    %p108 = scmp.ne.s32.totalorder %s91, %s107
    %p109 = scmp.eq.s32.totalorder %s15, 0
    %p110 = por %p108, %p109
    %p111 = scmp.le.s32.totalorder 1, %s9
    %p112 = scmp.lt.s32.totalorder %s9, 3
    %p113 = pnand %p111, %p112
    %p114 = pneg %p113
    // Predicated region
    $region9: #{_forward_impl.8} parent=5 // pred_check
      _
    $region10: #{_forward_impl.8} parent=5 // pred_check_branch
      %116 = sbr.rel (%p113) target = $region12
    $region11: #{_forward_impl.8} parent=5 // pred_region
      %s117 = ssub.s32 %s9, 1
      // Predicated region
      $region13: #{_forward_impl.8} parent=11 // pred_check
        %p118 = pneg %p56
      $region14: #{_forward_impl.8} parent=11 // pred_check_branch
        %120 = sbr.rel (%p118) target = $region16
      $region15: #{_forward_impl.8} parent=11 // pred_region
        _
      $region16: #{_forward_impl.8} parent=11 // pred_fallthru
        _
      // Predicated region
      $region17: #{_forward_impl.8} parent=11 // pred_check
        %p121 = pneg %p77
      $region18: #{_forward_impl.8} parent=11 // pred_check_branch
        %123 = sbr.rel (%p121) target = $region20
      $region19: #{_forward_impl.8} parent=11 // pred_region
        _
      $region20: #{_forward_impl.8} parent=11 // pred_fallthru
        _
    $region12: #{_forward_impl.8} parent=5 // pred_fallthru
      _
    %p124 = scmp.lt.s32.totalorder %s9, 2
    // Predicated region
    $region21: #{_forward_impl.8} parent=5 // pred_check
      %p125 = pneg %p124
    $region22: #{_forward_impl.8} parent=5 // pred_check_branch
      %127 = sbr.rel (%p125) target = $region24
    $region23: #{_forward_impl.8} parent=5 // pred_region
      // Predicated region
      $region25: #{_forward_impl.8} parent=23 // pred_check
        %p128 = pneg %p29
      $region26: #{_forward_impl.8} parent=23 // pred_check_branch
        %130 = sbr.rel (%p128) target = $region28
      $region27: #{_forward_impl.8} parent=23 // pred_region
        %p131 = scmp.lt.s32.totalorder %s9, 1
        %s132 = scalar_select %p131, %s9, 1
        %s133 = smul.addr %s132, 8
        %s134 = smul.addr %s133, 8
        %s135 = scalar_lea.vmem %s0, %s134
      $region28: #{_forward_impl.8} parent=23 // pred_fallthru
        _
    $region24: #{_forward_impl.8} parent=5 // pred_fallthru
      _
    %p136 = scmp.le.s32.totalorder 1, %s9
    %p137 = scmp.lt.s32.totalorder %s9, 3
    %p138 = pnand %p136, %p137
    %p139 = pneg %p138
    // Predicated region
    $region29: #{_forward_impl.8} parent=5 // pred_check
      _
    $region30: #{_forward_impl.8} parent=5 // pred_check_branch
      %141 = sbr.rel (%p138) target = $region32
    $region31: #{_forward_impl.8} parent=5 // pred_region
      %s142 = ssub.s32 %s9, 1
      %p143 = scmp.lt.s32.totalorder %s14, 1
      %s144 = scalar_select %p143, %s14, 1
      %s145 = smul.addr %s144, 8
      %s146 = smul.addr %s145, 8
      %s147 = scalar_lea.vmem %s0, %s146
      %p148 = pneg %p35
      %p149 = pneg %p32
      %p150 = pneg %p56
      %p151 = pneg %p53
      %p152 = pneg %p77
      %p153 = pneg %p74
      %p154 = pneg %p103
      %p155 = pneg %p100
      %p156 = scmp.lt.s32.totalorder %s14, 1
      %s157 = scalar_select %p156, %s14, 1
      %s158 = smul.addr %s157, 8
      %s159 = scalar_lea.vmem %s3, %s158
      %p160 = scmp.lt.s32.totalorder %s14, 1
      %s161 = scalar_select %p160, %s14, 1
      %s162 = smul.addr %s161, 8
      %s163 = smul.addr %s162, 8
      %s164 = scalar_lea.vmem %s0, %s163
      %p165 = scmp.lt.s32.totalorder %s14, 1
      %s166 = scalar_select %p165, %s14, 1
      %s167 = smul.addr %s166, 8
      %s168 = scalar_lea.vmem %s3, %s167
      %v170 = vld [vmem:[%s164] sm:$0xff]
      %v171 = vld [vmem:[%s164 + $0x8] sm:$0xff]
      %v172 = vpack.c.bf16 %v170, %v170
      %v173 = vpack.c.bf16 %v171, %v171
      %v174 = vld [vmem:[%s1] sm:$0xf]
      %v175 = vld [vmem:[%s1 + $0x4] sm:$0xf]
      %v176 = vld [vmem:[%s1 + $0x8] sm:$0xf]
      %v177 = vld [vmem:[%s1 + $0xc] sm:$0xf]
      %v178 = vld [vmem:[%s1 + $0x10] sm:$0xf]
      %v179 = vld [vmem:[%s1 + $0x14] sm:$0xf]
      %v180 = vld [vmem:[%s1 + $0x18] sm:$0xf]
      %v181 = vld [vmem:[%s1 + $0x1c] sm:$0xf]
      %v182 = vld [vmem:[%s1 + $0x20] sm:$0xf]
      %v183 = vld [vmem:[%s1 + $0x24] sm:$0xf]
      %v184 = vld [vmem:[%s1 + $0x28] sm:$0xf]
      %v185 = vld [vmem:[%s1 + $0x2c] sm:$0xf]
      %v186 = vld [vmem:[%s1 + $0x30] sm:$0xf]
      %v187 = vld [vmem:[%s1 + $0x34] sm:$0xf]
      %v188 = vld [vmem:[%s1 + $0x38] sm:$0xf]
      %v189 = vld [vmem:[%s1 + $0x3c] sm:$0xf]
      %v190 = vld [vmem:[%s1 + $0x40] sm:$0xf]
      %v191 = vld [vmem:[%s1 + $0x44] sm:$0xf]
      %v192 = vld [vmem:[%s1 + $0x48] sm:$0xf]
      %v193 = vld [vmem:[%s1 + $0x4c] sm:$0xf]
      %v194 = vld [vmem:[%s1 + $0x50] sm:$0xf]
      %v195 = vld [vmem:[%s1 + $0x54] sm:$0xf]
      %v196 = vld [vmem:[%s1 + $0x58] sm:$0xf]
      %v197 = vld [vmem:[%s1 + $0x5c] sm:$0xf]
      %v198 = vld [vmem:[%s1 + $0x60] sm:$0xf]
      %v199 = vld [vmem:[%s1 + $0x64] sm:$0xf]
      %v200 = vld [vmem:[%s1 + $0x68] sm:$0xf]
      %v201 = vld [vmem:[%s1 + $0x6c] sm:$0xf]
      %v202 = vld [vmem:[%s1 + $0x70] sm:$0xf]
      %v203 = vld [vmem:[%s1 + $0x74] sm:$0xf]
      %v204 = vld [vmem:[%s1 + $0x78] sm:$0xf]
      %v205 = vld [vmem:[%s1 + $0x7c] sm:$0xf]
      %v238 = vunpack.c.l.b16 %v174
      %v239 = vunpack.c.l.b16 %v175
      %v240 = vunpack.c.l.b16 %v176
      %v241 = vunpack.c.l.b16 %v177
      %v242 = vunpack.c.l.b16 %v178
      %v243 = vunpack.c.l.b16 %v179
      %v244 = vunpack.c.l.b16 %v180
      %v245 = vunpack.c.l.b16 %v181
      %v246 = vunpack.c.l.b16 %v182
      %v247 = vunpack.c.l.b16 %v183
      %v248 = vunpack.c.l.b16 %v184
      %v249 = vunpack.c.l.b16 %v185
      %v250 = vunpack.c.l.b16 %v186
      %v251 = vunpack.c.l.b16 %v187
      %v252 = vunpack.c.l.b16 %v188
      %v253 = vunpack.c.l.b16 %v189
      %v254 = vunpack.c.l.b16 %v190
      %v255 = vunpack.c.l.b16 %v191
      %v256 = vunpack.c.l.b16 %v192
      %v257 = vunpack.c.l.b16 %v193
      %v258 = vunpack.c.l.b16 %v194
      %v259 = vunpack.c.l.b16 %v195
      %v260 = vunpack.c.l.b16 %v196
      %v261 = vunpack.c.l.b16 %v197
      %v262 = vunpack.c.l.b16 %v198
      %v263 = vunpack.c.l.b16 %v199
      %v264 = vunpack.c.l.b16 %v200
      %v265 = vunpack.c.l.b16 %v201
      %v266 = vunpack.c.l.b16 %v202
      %v267 = vunpack.c.l.b16 %v203
      %v268 = vunpack.c.l.b16 %v204
      %v269 = vunpack.c.l.b16 %v205
      %v270 = vpack.c.b16 %v239, %v238
      %v271 = vpack.c.b16 %v241, %v240
      %v272 = vpack.c.b16 %v243, %v242
      %v273 = vpack.c.b16 %v245, %v244
      %v274 = vpack.c.b16 %v247, %v246
      %v275 = vpack.c.b16 %v249, %v248
      %v276 = vpack.c.b16 %v251, %v250
      %v277 = vpack.c.b16 %v253, %v252
      %v278 = vpack.c.b16 %v255, %v254
      %v279 = vpack.c.b16 %v257, %v256
      %v280 = vpack.c.b16 %v259, %v258
      %v281 = vpack.c.b16 %v261, %v260
      %v282 = vpack.c.b16 %v263, %v262
      %v283 = vpack.c.b16 %v265, %v264
      %v284 = vpack.c.b16 %v267, %v266
      %v285 = vpack.c.b16 %v269, %v268
      %302 = vmatprep.subr.bf16.mxu0 0
      %303 = vmatpush1.bf16.msra.mxu0 %v277
      %304 = vmatprep.subr.bf16.mxu0 0
      %305 = vmatpush1.bf16.msra.mxu0 %v276
      %306 = vmatprep.subr.bf16.mxu0 0
      %307 = vmatpush1.bf16.msra.mxu0 %v275
      %308 = vmatprep.subr.bf16.mxu0 0
      %309 = vmatpush1.bf16.msra.mxu0 %v274
      %310 = vmatprep.subr.bf16.mxu0 0
      %311 = vmatpush1.bf16.msra.mxu0 %v273
      %312 = vmatprep.subr.bf16.mxu0 0
      %313 = vmatpush1.bf16.msra.mxu0 %v272
      %314 = vmatprep.subr.bf16.mxu0 0
      %315 = vmatpush1.bf16.msra.mxu0 %v271
      %316 = vmatprep.subr.bf16.mxu0 0
      %317 = vmatpush1.bf16.msra.mxu0 %v270
      %318 = vmatprep.subr.bf16.mxu0 0
      %319 = vmatpush2.bf16.msra.mxu0 %v285
      %320 = vmatprep.subr.bf16.mxu0 0
      %321 = vmatpush2.bf16.msra.mxu0 %v284
      %322 = vmatprep.subr.bf16.mxu0 0
      %323 = vmatpush2.bf16.msra.mxu0 %v283
      %324 = vmatprep.subr.bf16.mxu0 0
      %325 = vmatpush2.bf16.msra.mxu0 %v282
      %326 = vmatprep.subr.bf16.mxu0 0
      %327 = vmatpush2.bf16.msra.mxu0 %v281
      %328 = vmatprep.subr.bf16.mxu0 0
      %329 = vmatpush2.bf16.msra.mxu0 %v280
      %330 = vmatprep.subr.bf16.mxu0 0
      %331 = vmatpush2.bf16.msra.mxu0 %v279
      %332 = vmatprep.subr.bf16.mxu0 0
      %333 = vmatpush2.bf16.msra.mxu0 %v278
      %334 = vmatprep.mubr.bf16.mxu0 %v173
      %335 = vmatmul.mubr.bf16.gmra.mxu0 %v172
      %v336 = vpop.f32.mrf.mxu0
      %v337 = vadd.f32 0.0, %v336
      %v338 = vpop.f32.mrf.mxu0
      %v339 = vpop.f32.mrf.mxu0
      %v340 = vpop.f32.mrf.mxu0
      %341 = vdwg.mxu0
      %v342 = vld [vmem:[%s2] sm:$0xf]
      %v343 = vpack.c.bf16 %v337, %v337
      %vm344 = vcmask 64512
      %v346 = vsel %vm344, %v342, 0
      %vm348 = vcmask 1043456
      %v350 = vsel %vm348, %v343, 0
      %352 = vmatprep.subr.bf16.mxu0 0
      %353 = vmatpush1.bf16.msra.mxu0 0
      %354 = vmatprep.subr.bf16.mxu0 0
      %355 = vmatpush1.bf16.msra.mxu0 0
      %356 = vmatprep.subr.bf16.mxu0 0
      %357 = vmatpush1.bf16.msra.mxu0 0
      %358 = vmatprep.subr.bf16.mxu0 0
      %359 = vmatpush1.bf16.msra.mxu0 0
      %360 = vmatprep.subr.bf16.mxu0 0
      %361 = vmatpush1.bf16.msra.mxu0 0
      %362 = vmatprep.subr.bf16.mxu0 0
      %363 = vmatpush1.bf16.msra.mxu0 0
      %364 = vmatprep.subr.bf16.mxu0 0
      %365 = vmatpush1.bf16.msra.mxu0 0
      %366 = vmatprep.subr.bf16.mxu0 0
      %367 = vmatpush1.bf16.msra.mxu0 %v350
      %368 = vmatprep.subr.bf16.mxu0 0
      %369 = vmatpush2.bf16.msra.mxu0 0
      %370 = vmatprep.subr.bf16.mxu0 0
      %371 = vmatpush2.bf16.msra.mxu0 0
      %372 = vmatprep.subr.bf16.mxu0 0
      %373 = vmatpush2.bf16.msra.mxu0 0
      %374 = vmatprep.subr.bf16.mxu0 0
      %375 = vmatpush2.bf16.msra.mxu0 0
      %376 = vmatprep.subr.bf16.mxu0 0
      %377 = vmatpush2.bf16.msra.mxu0 0
      %378 = vmatprep.subr.bf16.mxu0 0
      %379 = vmatpush2.bf16.msra.mxu0 0
      %380 = vmatprep.subr.bf16.mxu0 0
      %381 = vmatpush2.bf16.msra.mxu0 0
      %382 = vmatprep.subr.bf16.mxu0 0
      %383 = vmatpush2.bf16.msra.mxu0 0
      %384 = vmatprep.mubr.bf16.mxu0 0
      %385 = vmatmul.mubr.bf16.gmra.mxu0 %v346
      %v386 = vpop.f32.mrf.mxu0
      %v387 = vadd.f32 0.0, %v386
      %v388 = vpop.f32.mrf.mxu0
      %v389 = vpop.f32.mrf.mxu0
      %v390 = vpop.f32.mrf.mxu0
      %391 = vdwg.mxu0
      %vm392 = vcmask 523264
      %393 = vst.msk [vmem:[%s168] sm:$0xff] %vm392, %v387
      %p394 = scmp.lt.s32.totalorder %s14, 1
      %s395 = scalar_select %p394, %s14, 1
      %s396 = smul.addr %s395, 8
      %s397 = scalar_lea.vmem %s3, %s396
      // Predicated region
      $region33: #{_forward_impl.8} parent=31 // pred_check
        %p398 = pneg %p100
      $region34: #{_forward_impl.8} parent=31 // pred_check_branch
        %400 = sbr.rel (%p398) target = $region36
      $region35: #{_forward_impl.8} parent=31 // pred_region
        _
      $region36: #{_forward_impl.8} parent=31 // pred_fallthru
        _
    $region32: #{_forward_impl.8} parent=5 // pred_fallthru
      _
    %p401 = scmp.le.s32.totalorder 2, %s9
    // Predicated region
    $region37: #{_forward_impl.8} parent=5 // pred_check
      %p402 = pneg %p401
    $region38: #{_forward_impl.8} parent=5 // pred_check_branch
      %404 = sbr.rel (%p402) target = $region40
    $region39: #{_forward_impl.8} parent=5 // pred_region
      %s405 = ssub.s32 %s9, 2
      // Predicated region
      $region41: #{_forward_impl.8} parent=39 // pred_check
        %p406 = pneg %p106
      $region42: #{_forward_impl.8} parent=39 // pred_check_branch
        %408 = sbr.rel (%p406) target = $region44
      $region43: #{_forward_impl.8} parent=39 // pred_region
        %p409 = scmp.lt.s32.totalorder %s15, 1
        %s410 = scalar_select %p409, %s15, 1
        %s411 = smul.addr %s410, 8
        %s412 = scalar_lea.vmem %s3, %s411
      $region44: #{_forward_impl.8} parent=39 // pred_fallthru
        _
    $region40: #{_forward_impl.8} parent=5 // pred_fallthru
      _
  $region6: #{_forward_impl.8} parent=0 // loop_footer
    %s13 = sadd.s32 1, %s9
  $region7: #{_forward_impl.8} parent=0 // loop_footer_branch
    %8 = sbr.rel target = $region3
  $region8: #{_forward_impl.8} parent=0 // loop_exit
    _

// kernel: _forward_impl.10
$region0: #{_forward_impl.10}
  #allocation0 [shape = 'u32[]', space=smem, size = 0x4, offset = 0x4, fixed_abs, tag = 'smem constant byte address 0x4 - core index']
  #allocation1 [shape = 'u32[144,128]{1,0:T(1,128)}', space=vmem, size = 0x12000, scoped, tag = 'internal scratch']
  %s0 = inlined_call_operand.vmem [shape: f32[2,28,256], index: 0, kind: input, shape index: {}]
  %s1 = inlined_call_operand.vmem [shape: bf16[256,16], index: 1, kind: input, shape index: {}]
  %s2 = inlined_call_operand.vmem [shape: bf16[12,16], index: 2, kind: input, shape index: {}]
  %s3 = inlined_call_operand.vmem [shape: f32[2,12,16], index: 3, kind: output, shape index: {}]
  %s4 = sld [smem:[#allocation0]]
  $region45: #{_forward_impl.10} parent=0
    _
  %s6 = ssub.s32 1, %s4
  %s7 = scalar_select 0, %s6, %s4
  loop: start=0, step=1, limit=4
  $region2: #{_forward_impl.10} parent=0 // loop_pre_header
    _
  $region3: #{_forward_impl.10} parent=0 // loop_header
    %s9 = sphi 0, %s13
    %p10 = scmp.ge.s32.totalorder %s9, 4
    %s19 = sphi 0, %s21
    %s22 = sphi 0, %s19
    %s23 = sphi 0, %s22
    %s39 = sphi 0, %s23
    %s43 = sphi 0, %s43
    %s45 = sphi 0, %s43
    %s46 = sphi 0, %s45
    %s60 = sphi 0, %s46
    %s64 = sphi 0, %s64
    %s66 = sphi 0, %s64
    %s67 = sphi 0, %s66
    %s81 = sphi 0, %s67
    %s87 = sphi 0, %s89
    %s90 = sphi 0, %s87
    %s91 = sphi 0, %s90
    %s107 = sphi 0, %s91
  $region4: #{_forward_impl.10} parent=0 // loop_header_branch
    %12 = sbr.rel (%p10) target = $region8
  $region5: #{_forward_impl.10} parent=0 // loop_body
    %s14 = ssub.s32 %s9, 1
    %s15 = ssub.s32 %s9, 2
    %s16 = sadd.s32 %s9, 1
    %s17 = ssub.s32 %s9, %s16
    %p18 = scmp.eq.s32.totalorder %s17, 0
    %s20 = sadd.s32 %s19, 1
    %s21 = scalar_select %p18, %s19, %s20
    %p24 = pneg %p18
    %p25 = scmp.eq.s32.totalorder %s9, 1
    %p26 = por %p24, %p25
    %p27 = scmp.ne.s32.totalorder %s19, %s22
    %p28 = scmp.eq.s32.totalorder %s9, 0
    %p29 = por %p27, %p28
    %p30 = scmp.ne.s32.totalorder %s19, %s22
    %p31 = scmp.eq.s32.totalorder %s14, 1
    %p32 = por %p30, %p31
    %p33 = scmp.ne.s32.totalorder %s22, %s23
    %p34 = scmp.eq.s32.totalorder %s14, 0
    %p35 = por %p33, %p34
    %p36 = scmp.ne.s32.totalorder %s22, %s23
    %p37 = scmp.eq.s32.totalorder %s15, 1
    %p38 = por %p36, %p37
    %p40 = scmp.ne.s32.totalorder %s23, %s39
    %p41 = scmp.eq.s32.totalorder %s15, 0
    %p42 = por %p40, %p41
    %s44 = sadd.s32 %s43, 1
    %p47 = scmp.eq.s32.totalorder %s9, 1
    %p48 = scmp.ne.s32.totalorder %s43, %s45
    %p49 = scmp.eq.s32.totalorder %s9, 0
    %p50 = por %p48, %p49
    %p51 = scmp.ne.s32.totalorder %s43, %s45
    %p52 = scmp.eq.s32.totalorder %s14, 1
    %p53 = por %p51, %p52
    %p54 = scmp.ne.s32.totalorder %s45, %s46
    %p55 = scmp.eq.s32.totalorder %s14, 0
    %p56 = por %p54, %p55
    %p57 = scmp.ne.s32.totalorder %s45, %s46
    %p58 = scmp.eq.s32.totalorder %s15, 1
    %p59 = por %p57, %p58
    %p61 = scmp.ne.s32.totalorder %s46, %s60
    %p62 = scmp.eq.s32.totalorder %s15, 0
    %p63 = por %p61, %p62
    %s65 = sadd.s32 %s64, 1
    %p68 = scmp.eq.s32.totalorder %s9, 1
    %p69 = scmp.ne.s32.totalorder %s64, %s66
    %p70 = scmp.eq.s32.totalorder %s9, 0
    %p71 = por %p69, %p70
    %p72 = scmp.ne.s32.totalorder %s64, %s66
    %p73 = scmp.eq.s32.totalorder %s14, 1
    %p74 = por %p72, %p73
    %p75 = scmp.ne.s32.totalorder %s66, %s67
    %p76 = scmp.eq.s32.totalorder %s14, 0
    %p77 = por %p75, %p76
    %p78 = scmp.ne.s32.totalorder %s66, %s67
    %p79 = scmp.eq.s32.totalorder %s15, 1
    %p80 = por %p78, %p79
    %p82 = scmp.ne.s32.totalorder %s67, %s81
    %p83 = scmp.eq.s32.totalorder %s15, 0
    %p84 = por %p82, %p83
    %s85 = ssub.s32 %s9, %s16
    %p86 = scmp.eq.s32.totalorder %s85, 0
    %s88 = sadd.s32 %s87, 1
    %s89 = scalar_select %p86, %s87, %s88
    %p92 = pneg %p86
    %p93 = scmp.eq.s32.totalorder %s9, 1
    %p94 = por %p92, %p93
    %p95 = scmp.ne.s32.totalorder %s87, %s90
    %p96 = scmp.eq.s32.totalorder %s9, 0
    %p97 = por %p95, %p96
    %p98 = scmp.ne.s32.totalorder %s87, %s90
    %p99 = scmp.eq.s32.totalorder %s14, 1
    %p100 = por %p98, %p99
    %p101 = scmp.ne.s32.totalorder %s90, %s91
    %p102 = scmp.eq.s32.totalorder %s14, 0
    %p103 = por %p101, %p102
    %p104 = scmp.ne.s32.totalorder %s90, %s91
    %p105 = scmp.eq.s32.totalorder %s15, 1
    %p106 = por %p104, %p105
    %p108 = scmp.ne.s32.totalorder %s91, %s107
    %p109 = scmp.eq.s32.totalorder %s15, 0
    %p110 = por %p108, %p109
    %p111 = scmp.le.s32.totalorder 1, %s9
    %p112 = scmp.lt.s32.totalorder %s9, 3
    %p113 = pnand %p111, %p112
    %p114 = pneg %p113
    // Predicated region
    $region9: #{_forward_impl.10} parent=5 // pred_check
      _
    $region10: #{_forward_impl.10} parent=5 // pred_check_branch
      %116 = sbr.rel (%p113) target = $region12
    $region11: #{_forward_impl.10} parent=5 // pred_region
      %s117 = ssub.s32 %s9, 1
      // Predicated region
      $region13: #{_forward_impl.10} parent=11 // pred_check
        %p118 = pneg %p56
      $region14: #{_forward_impl.10} parent=11 // pred_check_branch
        %120 = sbr.rel (%p118) target = $region16
      $region15: #{_forward_impl.10} parent=11 // pred_region
        _
      $region16: #{_forward_impl.10} parent=11 // pred_fallthru
        _
      // Predicated region
      $region17: #{_forward_impl.10} parent=11 // pred_check
        %p121 = pneg %p77
      $region18: #{_forward_impl.10} parent=11 // pred_check_branch
        %123 = sbr.rel (%p121) target = $region20
      $region19: #{_forward_impl.10} parent=11 // pred_region
        _
      $region20: #{_forward_impl.10} parent=11 // pred_fallthru
        _
    $region12: #{_forward_impl.10} parent=5 // pred_fallthru
      _
    %p124 = scmp.lt.s32.totalorder %s9, 2
    // Predicated region
    $region21: #{_forward_impl.10} parent=5 // pred_check
      %p125 = pneg %p124
    $region22: #{_forward_impl.10} parent=5 // pred_check_branch
      %127 = sbr.rel (%p125) target = $region24
    $region23: #{_forward_impl.10} parent=5 // pred_region
      // Predicated region
      $region25: #{_forward_impl.10} parent=23 // pred_check
        %p128 = pneg %p29
      $region26: #{_forward_impl.10} parent=23 // pred_check_branch
        %130 = sbr.rel (%p128) target = $region28
      $region27: #{_forward_impl.10} parent=23 // pred_region
        %p131 = scmp.lt.s32.totalorder %s9, 1
        %s132 = scalar_select %p131, %s9, 1
        %s133 = smul.addr %s132, 8
        %s134 = smul.addr %s133, 8
        %s135 = scalar_lea.vmem %s0, %s134
      $region28: #{_forward_impl.10} parent=23 // pred_fallthru
        _
    $region24: #{_forward_impl.10} parent=5 // pred_fallthru
      _
    %p136 = scmp.le.s32.totalorder 1, %s9
    %p137 = scmp.lt.s32.totalorder %s9, 3
    %p138 = pnand %p136, %p137
    %p139 = pneg %p138
    // Predicated region
    $region29: #{_forward_impl.10} parent=5 // pred_check
      _
    $region30: #{_forward_impl.10} parent=5 // pred_check_branch
      %141 = sbr.rel (%p138) target = $region32
    $region31: #{_forward_impl.10} parent=5 // pred_region
      %s142 = ssub.s32 %s9, 1
      %p143 = scmp.lt.s32.totalorder %s14, 1
      %s144 = scalar_select %p143, %s14, 1
      %s145 = smul.addr %s144, 8
      %s146 = smul.addr %s145, 8
      %s147 = scalar_lea.vmem %s0, %s146
      %p148 = pneg %p35
      %p149 = pneg %p32
      %p150 = pneg %p56
      %p151 = pneg %p53
      %p152 = pneg %p77
      %p153 = pneg %p74
      %p154 = pneg %p103
      %p155 = pneg %p100
      %p156 = scmp.lt.s32.totalorder %s14, 1
      %s157 = scalar_select %p156, %s14, 1
      %s158 = smul.addr %s157, 2
      %s159 = smul.addr %s158, 8
      %s160 = scalar_lea.vmem %s3, %s159
      %p161 = scmp.lt.s32.totalorder %s14, 1
      %s162 = scalar_select %p161, %s14, 1
      %s163 = smul.addr %s162, 8
      %s164 = smul.addr %s163, 8
      %s165 = scalar_lea.vmem %s0, %s164
      %p166 = scmp.lt.s32.totalorder %s14, 1
      %s167 = scalar_select %p166, %s14, 1
      %s168 = smul.addr %s167, 2
      %s169 = smul.addr %s168, 8
      %s170 = scalar_lea.vmem %s3, %s169
      %v172 = vld [vmem:[%s165] sm:$0xff]
      %v173 = vld [vmem:[%s165 + $0x8] sm:$0xff]
      %v174 = vld [vmem:[%s165 + $0x10] sm:$0xff]
      %v175 = vld [vmem:[%s165 + $0x18] sm:$0xff]
      %v176 = vpack.c.bf16 %v174, %v172
      %v177 = vpack.c.bf16 %v175, %v173
      %v178 = vld [vmem:[%s1] sm:$0xf]
      %v179 = vld [vmem:[%s1 + $0x4] sm:$0xf]
      %v180 = vld [vmem:[%s1 + $0x8] sm:$0xf]
      %v181 = vld [vmem:[%s1 + $0xc] sm:$0xf]
      %v182 = vld [vmem:[%s1 + $0x10] sm:$0xf]
      %v183 = vld [vmem:[%s1 + $0x14] sm:$0xf]
      %v184 = vld [vmem:[%s1 + $0x18] sm:$0xf]
      %v185 = vld [vmem:[%s1 + $0x1c] sm:$0xf]
      %v186 = vld [vmem:[%s1 + $0x20] sm:$0xf]
      %v187 = vld [vmem:[%s1 + $0x24] sm:$0xf]
      %v188 = vld [vmem:[%s1 + $0x28] sm:$0xf]
      %v189 = vld [vmem:[%s1 + $0x2c] sm:$0xf]
      %v190 = vld [vmem:[%s1 + $0x30] sm:$0xf]
      %v191 = vld [vmem:[%s1 + $0x34] sm:$0xf]
      %v192 = vld [vmem:[%s1 + $0x38] sm:$0xf]
      %v193 = vld [vmem:[%s1 + $0x3c] sm:$0xf]
      %v194 = vld [vmem:[%s1 + $0x40] sm:$0xf]
      %v195 = vld [vmem:[%s1 + $0x44] sm:$0xf]
      %v196 = vld [vmem:[%s1 + $0x48] sm:$0xf]
      %v197 = vld [vmem:[%s1 + $0x4c] sm:$0xf]
      %v198 = vld [vmem:[%s1 + $0x50] sm:$0xf]
      %v199 = vld [vmem:[%s1 + $0x54] sm:$0xf]
      %v200 = vld [vmem:[%s1 + $0x58] sm:$0xf]
      %v201 = vld [vmem:[%s1 + $0x5c] sm:$0xf]
      %v202 = vld [vmem:[%s1 + $0x60] sm:$0xf]
      %v203 = vld [vmem:[%s1 + $0x64] sm:$0xf]
      %v204 = vld [vmem:[%s1 + $0x68] sm:$0xf]
      %v205 = vld [vmem:[%s1 + $0x6c] sm:$0xf]
      %v206 = vld [vmem:[%s1 + $0x70] sm:$0xf]
      %v207 = vld [vmem:[%s1 + $0x74] sm:$0xf]
      %v208 = vld [vmem:[%s1 + $0x78] sm:$0xf]
      %v209 = vld [vmem:[%s1 + $0x7c] sm:$0xf]
      %v242 = vunpack.c.l.b16 %v178
      %v243 = vunpack.c.l.b16 %v179
      %v244 = vunpack.c.l.b16 %v180
      %v245 = vunpack.c.l.b16 %v181
      %v246 = vunpack.c.l.b16 %v182
      %v247 = vunpack.c.l.b16 %v183
      %v248 = vunpack.c.l.b16 %v184
      %v249 = vunpack.c.l.b16 %v185
      %v250 = vunpack.c.l.b16 %v186
      %v251 = vunpack.c.l.b16 %v187
      %v252 = vunpack.c.l.b16 %v188
      %v253 = vunpack.c.l.b16 %v189
      %v254 = vunpack.c.l.b16 %v190
      %v255 = vunpack.c.l.b16 %v191
      %v256 = vunpack.c.l.b16 %v192
      %v257 = vunpack.c.l.b16 %v193
      %v258 = vunpack.c.l.b16 %v194
      %v259 = vunpack.c.l.b16 %v195
      %v260 = vunpack.c.l.b16 %v196
      %v261 = vunpack.c.l.b16 %v197
      %v262 = vunpack.c.l.b16 %v198
      %v263 = vunpack.c.l.b16 %v199
      %v264 = vunpack.c.l.b16 %v200
      %v265 = vunpack.c.l.b16 %v201
      %v266 = vunpack.c.l.b16 %v202
      %v267 = vunpack.c.l.b16 %v203
      %v268 = vunpack.c.l.b16 %v204
      %v269 = vunpack.c.l.b16 %v205
      %v270 = vunpack.c.l.b16 %v206
      %v271 = vunpack.c.l.b16 %v207
      %v272 = vunpack.c.l.b16 %v208
      %v273 = vunpack.c.l.b16 %v209
      %v274 = vpack.c.b16 %v243, %v242
      %v275 = vpack.c.b16 %v245, %v244
      %v276 = vpack.c.b16 %v247, %v246
      %v277 = vpack.c.b16 %v249, %v248
      %v278 = vpack.c.b16 %v251, %v250
      %v279 = vpack.c.b16 %v253, %v252
      %v280 = vpack.c.b16 %v255, %v254
      %v281 = vpack.c.b16 %v257, %v256
      %v282 = vpack.c.b16 %v259, %v258
      %v283 = vpack.c.b16 %v261, %v260
      %v284 = vpack.c.b16 %v263, %v262
      %v285 = vpack.c.b16 %v265, %v264
      %v286 = vpack.c.b16 %v267, %v266
      %v287 = vpack.c.b16 %v269, %v268
      %v288 = vpack.c.b16 %v271, %v270
      %v289 = vpack.c.b16 %v273, %v272
      %306 = vmatprep.subr.bf16.mxu0 0
      %307 = vmatpush1.bf16.msra.mxu0 %v281
      %308 = vmatprep.subr.bf16.mxu0 0
      %309 = vmatpush1.bf16.msra.mxu0 %v280
      %310 = vmatprep.subr.bf16.mxu0 0
      %311 = vmatpush1.bf16.msra.mxu0 %v279
      %312 = vmatprep.subr.bf16.mxu0 0
      %313 = vmatpush1.bf16.msra.mxu0 %v278
      %314 = vmatprep.subr.bf16.mxu0 0
      %315 = vmatpush1.bf16.msra.mxu0 %v277
      %316 = vmatprep.subr.bf16.mxu0 0
      %317 = vmatpush1.bf16.msra.mxu0 %v276
      %318 = vmatprep.subr.bf16.mxu0 0
      %319 = vmatpush1.bf16.msra.mxu0 %v275
      %320 = vmatprep.subr.bf16.mxu0 0
      %321 = vmatpush1.bf16.msra.mxu0 %v274
      %322 = vmatprep.subr.bf16.mxu0 0
      %323 = vmatpush2.bf16.msra.mxu0 %v289
      %324 = vmatprep.subr.bf16.mxu0 0
      %325 = vmatpush2.bf16.msra.mxu0 %v288
      %326 = vmatprep.subr.bf16.mxu0 0
      %327 = vmatpush2.bf16.msra.mxu0 %v287
      %328 = vmatprep.subr.bf16.mxu0 0
      %329 = vmatpush2.bf16.msra.mxu0 %v286
      %330 = vmatprep.subr.bf16.mxu0 0
      %331 = vmatpush2.bf16.msra.mxu0 %v285
      %332 = vmatprep.subr.bf16.mxu0 0
      %333 = vmatpush2.bf16.msra.mxu0 %v284
      %334 = vmatprep.subr.bf16.mxu0 0
      %335 = vmatpush2.bf16.msra.mxu0 %v283
      %336 = vmatprep.subr.bf16.mxu0 0
      %337 = vmatpush2.bf16.msra.mxu0 %v282
      %338 = vmatprep.mubr.bf16.mxu0 %v177
      %339 = vmatmul.mubr.bf16.gmra.mxu0 %v176
      %v340 = vpop.f32.mrf.mxu0
      %v341 = vadd.f32 0.0, %v340
      %v342 = vpop.f32.mrf.mxu0
      %v343 = vpop.f32.mrf.mxu0
      %v344 = vadd.f32 0.0, %v343
      %v345 = vpop.f32.mrf.mxu0
      %346 = vdwg.mxu0
      %v347 = vld [vmem:[%s2] sm:$0xf]
      %v348 = vld [vmem:[%s2 + $0x4] sm:$0x3]
      %v349 = vpack.c.bf16 %v344, %v341
      %v352 = vunpack.c.l.b16 %v347
      %v353 = vunpack.c.l.b16 %v348
      %v354 = vpack.c.b16 %v353, %v352
      %vm355 = vcmask 130048
      %v357 = vsel %vm355, %v354, 0
      %359 = vmatprep.subr.bf16.mxu0 0
      %360 = vmatpush1.bf16.msra.mxu0 0
      %361 = vmatprep.subr.bf16.mxu0 0
      %362 = vmatpush1.bf16.msra.mxu0 0
      %363 = vmatprep.subr.bf16.mxu0 0
      %364 = vmatpush1.bf16.msra.mxu0 0
      %365 = vmatprep.subr.bf16.mxu0 0
      %366 = vmatpush1.bf16.msra.mxu0 0
      %367 = vmatprep.subr.bf16.mxu0 0
      %368 = vmatpush1.bf16.msra.mxu0 0
      %369 = vmatprep.subr.bf16.mxu0 0
      %370 = vmatpush1.bf16.msra.mxu0 0
      %371 = vmatprep.subr.bf16.mxu0 0
      %372 = vmatpush1.bf16.msra.mxu0 0
      %373 = vmatprep.subr.bf16.mxu0 0
      %374 = vmatpush1.bf16.msra.mxu0 %v349
      %375 = vmatprep.subr.bf16.mxu0 0
      %376 = vmatpush2.bf16.msra.mxu0 0
      %377 = vmatprep.subr.bf16.mxu0 0
      %378 = vmatpush2.bf16.msra.mxu0 0
      %379 = vmatprep.subr.bf16.mxu0 0
      %380 = vmatpush2.bf16.msra.mxu0 0
      %381 = vmatprep.subr.bf16.mxu0 0
      %382 = vmatpush2.bf16.msra.mxu0 0
      %383 = vmatprep.subr.bf16.mxu0 0
      %384 = vmatpush2.bf16.msra.mxu0 0
      %385 = vmatprep.subr.bf16.mxu0 0
      %386 = vmatpush2.bf16.msra.mxu0 0
      %387 = vmatprep.subr.bf16.mxu0 0
      %388 = vmatpush2.bf16.msra.mxu0 0
      %389 = vmatprep.subr.bf16.mxu0 0
      %390 = vmatpush2.bf16.msra.mxu0 0
      %391 = vmatprep.mubr.bf16.mxu0 0
      %392 = vmatmul.mubr.bf16.gmra.mxu0 %v357
      %v393 = vpop.f32.mrf.mxu0
      %v394 = vadd.f32 0.0, %v393
      %v395 = vpop.f32.mrf.mxu0
      %v396 = vpop.f32.mrf.mxu0
      %v397 = vadd.f32 0.0, %v396
      %v398 = vpop.f32.mrf.mxu0
      %399 = vdwg.mxu0
      %400 = vst.msk [vmem:[%s170] sm:$0xff] %vm355, %v394
      %vm401 = vcmask 125952
      %402 = vst.msk [vmem:[%s170 + $0x8] sm:$0xf] %vm401, %v397
      %p403 = scmp.lt.s32.totalorder %s14, 1
      %s404 = scalar_select %p403, %s14, 1
      %s405 = smul.addr %s404, 2
      %s406 = smul.addr %s405, 8
      %s407 = scalar_lea.vmem %s3, %s406
      // Predicated region
      $region33: #{_forward_impl.10} parent=31 // pred_check
        %p408 = pneg %p100
      $region34: #{_forward_impl.10} parent=31 // pred_check_branch
        %410 = sbr.rel (%p408) target = $region36
      $region35: #{_forward_impl.10} parent=31 // pred_region
        _
      $region36: #{_forward_impl.10} parent=31 // pred_fallthru
        _
    $region32: #{_forward_impl.10} parent=5 // pred_fallthru
      _
    %p411 = scmp.le.s32.totalorder 2, %s9
    // Predicated region
    $region37: #{_forward_impl.10} parent=5 // pred_check
      %p412 = pneg %p411
    $region38: #{_forward_impl.10} parent=5 // pred_check_branch
      %414 = sbr.rel (%p412) target = $region40
    $region39: #{_forward_impl.10} parent=5 // pred_region
      %s415 = ssub.s32 %s9, 2
      // Predicated region
      $region41: #{_forward_impl.10} parent=39 // pred_check
        %p416 = pneg %p106
      $region42: #{_forward_impl.10} parent=39 // pred_check_branch
        %418 = sbr.rel (%p416) target = $region44
      $region43: #{_forward_impl.10} parent=39 // pred_region
        %p419 = scmp.lt.s32.totalorder %s15, 1
        %s420 = scalar_select %p419, %s15, 1
        %s421 = smul.addr %s420, 2
        %s422 = smul.addr %s421, 8
        %s423 = scalar_lea.vmem %s3, %s422
      $region44: #{_forward_impl.10} parent=39 // pred_fallthru
        _
    $region40: #{_forward_impl.10} parent=5 // pred_fallthru
      _
  $region6: #{_forward_impl.10} parent=0 // loop_footer
    %s13 = sadd.s32 1, %s9
  $region7: #{_forward_impl.10} parent=0 // loop_footer_branch
    %8 = sbr.rel target = $region3
  $region8: #{_forward_impl.10} parent=0 // loop_exit
    _

// kernel: _forward_impl.11
$region0: #{_forward_impl.11}
  #allocation0 [shape = 'u32[]', space=smem, size = 0x4, offset = 0x4, fixed_abs, tag = 'smem constant byte address 0x4 - core index']
  #allocation1 [shape = 'u32[144,128]{1,0:T(1,128)}', space=vmem, size = 0x12000, scoped, tag = 'internal scratch']
  %s0 = inlined_call_operand.vmem [shape: f32[2,12,16], index: 0, kind: input, shape index: {}]
  %s1 = inlined_call_operand.vmem [shape: f32[12,1], index: 1, kind: input, shape index: {}]
  %s2 = inlined_call_operand.vmem [shape: f32[12,1], index: 2, kind: input, shape index: {}]
  %s3 = inlined_call_operand.vmem [shape: bf16[16,256], index: 3, kind: input, shape index: {}]
  %s4 = inlined_call_operand.vmem [shape: f32[2,12,256], index: 4, kind: output, shape index: {}]
  %s5 = sld [smem:[#allocation0]]
  $region49: #{_forward_impl.11} parent=0
    _
  %s7 = ssub.s32 1, %s5
  %s8 = scalar_select 0, %s7, %s5
  loop: start=0, step=1, limit=4
  $region2: #{_forward_impl.11} parent=0 // loop_pre_header
    _
  $region3: #{_forward_impl.11} parent=0 // loop_header
    %s10 = sphi 0, %s14
    %p11 = scmp.ge.s32.totalorder %s10, 4
    %s20 = sphi 0, %s22
    %s23 = sphi 0, %s20
    %s24 = sphi 0, %s23
    %s40 = sphi 0, %s24
    %s44 = sphi 0, %s44
    %s46 = sphi 0, %s44
    %s47 = sphi 0, %s46
    %s61 = sphi 0, %s47
    %s65 = sphi 0, %s65
    %s67 = sphi 0, %s65
    %s68 = sphi 0, %s67
    %s82 = sphi 0, %s68
    %s86 = sphi 0, %s86
    %s88 = sphi 0, %s86
    %s89 = sphi 0, %s88
    %s103 = sphi 0, %s89
    %s109 = sphi 0, %s111
    %s112 = sphi 0, %s109
    %s113 = sphi 0, %s112
    %s129 = sphi 0, %s113
  $region4: #{_forward_impl.11} parent=0 // loop_header_branch
    %13 = sbr.rel (%p11) target = $region8
  $region5: #{_forward_impl.11} parent=0 // loop_body
    %s15 = ssub.s32 %s10, 1
    %s16 = ssub.s32 %s10, 2
    %s17 = sadd.s32 %s10, 1
    %s18 = ssub.s32 %s10, %s17
    %p19 = scmp.eq.s32.totalorder %s18, 0
    %s21 = sadd.s32 %s20, 1
    %s22 = scalar_select %p19, %s20, %s21
    %p25 = pneg %p19
    %p26 = scmp.eq.s32.totalorder %s10, 1
    %p27 = por %p25, %p26
    %p28 = scmp.ne.s32.totalorder %s20, %s23
    %p29 = scmp.eq.s32.totalorder %s10, 0
    %p30 = por %p28, %p29
    %p31 = scmp.ne.s32.totalorder %s20, %s23
    %p32 = scmp.eq.s32.totalorder %s15, 1
    %p33 = por %p31, %p32
    %p34 = scmp.ne.s32.totalorder %s23, %s24
    %p35 = scmp.eq.s32.totalorder %s15, 0
    %p36 = por %p34, %p35
    %p37 = scmp.ne.s32.totalorder %s23, %s24
    %p38 = scmp.eq.s32.totalorder %s16, 1
    %p39 = por %p37, %p38
    %p41 = scmp.ne.s32.totalorder %s24, %s40
    %p42 = scmp.eq.s32.totalorder %s16, 0
    %p43 = por %p41, %p42
    %s45 = sadd.s32 %s44, 1
    %p48 = scmp.eq.s32.totalorder %s10, 1
    %p49 = scmp.ne.s32.totalorder %s44, %s46
    %p50 = scmp.eq.s32.totalorder %s10, 0
    %p51 = por %p49, %p50
    %p52 = scmp.ne.s32.totalorder %s44, %s46
    %p53 = scmp.eq.s32.totalorder %s15, 1
    %p54 = por %p52, %p53
    %p55 = scmp.ne.s32.totalorder %s46, %s47
    %p56 = scmp.eq.s32.totalorder %s15, 0
    %p57 = por %p55, %p56
    %p58 = scmp.ne.s32.totalorder %s46, %s47
    %p59 = scmp.eq.s32.totalorder %s16, 1
    %p60 = por %p58, %p59
    %p62 = scmp.ne.s32.totalorder %s47, %s61
    %p63 = scmp.eq.s32.totalorder %s16, 0
    %p64 = por %p62, %p63
    %s66 = sadd.s32 %s65, 1
    %p69 = scmp.eq.s32.totalorder %s10, 1
    %p70 = scmp.ne.s32.totalorder %s65, %s67
    %p71 = scmp.eq.s32.totalorder %s10, 0
    %p72 = por %p70, %p71
    %p73 = scmp.ne.s32.totalorder %s65, %s67
    %p74 = scmp.eq.s32.totalorder %s15, 1
    %p75 = por %p73, %p74
    %p76 = scmp.ne.s32.totalorder %s67, %s68
    %p77 = scmp.eq.s32.totalorder %s15, 0
    %p78 = por %p76, %p77
    %p79 = scmp.ne.s32.totalorder %s67, %s68
    %p80 = scmp.eq.s32.totalorder %s16, 1
    %p81 = por %p79, %p80
    %p83 = scmp.ne.s32.totalorder %s68, %s82
    %p84 = scmp.eq.s32.totalorder %s16, 0
    %p85 = por %p83, %p84
    %s87 = sadd.s32 %s86, 1
    %p90 = scmp.eq.s32.totalorder %s10, 1
    %p91 = scmp.ne.s32.totalorder %s86, %s88
    %p92 = scmp.eq.s32.totalorder %s10, 0
    %p93 = por %p91, %p92
    %p94 = scmp.ne.s32.totalorder %s86, %s88
    %p95 = scmp.eq.s32.totalorder %s15, 1
    %p96 = por %p94, %p95
    %p97 = scmp.ne.s32.totalorder %s88, %s89
    %p98 = scmp.eq.s32.totalorder %s15, 0
    %p99 = por %p97, %p98
    %p100 = scmp.ne.s32.totalorder %s88, %s89
    %p101 = scmp.eq.s32.totalorder %s16, 1
    %p102 = por %p100, %p101
    %p104 = scmp.ne.s32.totalorder %s89, %s103
    %p105 = scmp.eq.s32.totalorder %s16, 0
    %p106 = por %p104, %p105
    %s107 = ssub.s32 %s10, %s17
    %p108 = scmp.eq.s32.totalorder %s107, 0
    %s110 = sadd.s32 %s109, 1
    %s111 = scalar_select %p108, %s109, %s110
    %p114 = pneg %p108
    %p115 = scmp.eq.s32.totalorder %s10, 1
    %p116 = por %p114, %p115
    %p117 = scmp.ne.s32.totalorder %s109, %s112
    %p118 = scmp.eq.s32.totalorder %s10, 0
    %p119 = por %p117, %p118
    %p120 = scmp.ne.s32.totalorder %s109, %s112
    %p121 = scmp.eq.s32.totalorder %s15, 1
    %p122 = por %p120, %p121
    %p123 = scmp.ne.s32.totalorder %s112, %s113
    %p124 = scmp.eq.s32.totalorder %s15, 0
    %p125 = por %p123, %p124
    %p126 = scmp.ne.s32.totalorder %s112, %s113
    %p127 = scmp.eq.s32.totalorder %s16, 1
    %p128 = por %p126, %p127
    %p130 = scmp.ne.s32.totalorder %s113, %s129
    %p131 = scmp.eq.s32.totalorder %s16, 0
    %p132 = por %p130, %p131
    %p133 = scmp.le.s32.totalorder 1, %s10
    %p134 = scmp.lt.s32.totalorder %s10, 3
    %p135 = pnand %p133, %p134
    %p136 = pneg %p135
    // Predicated region
    $region9: #{_forward_impl.11} parent=5 // pred_check
      _
    $region10: #{_forward_impl.11} parent=5 // pred_check_branch
      %138 = sbr.rel (%p135) target = $region12
    $region11: #{_forward_impl.11} parent=5 // pred_region
      %s139 = ssub.s32 %s10, 1
      // Predicated region
      $region13: #{_forward_impl.11} parent=11 // pred_check
        %p140 = pneg %p57
      $region14: #{_forward_impl.11} parent=11 // pred_check_branch
        %142 = sbr.rel (%p140) target = $region16
      $region15: #{_forward_impl.11} parent=11 // pred_region
        _
      $region16: #{_forward_impl.11} parent=11 // pred_fallthru
        _
      // Predicated region
      $region17: #{_forward_impl.11} parent=11 // pred_check
        %p143 = pneg %p78
      $region18: #{_forward_impl.11} parent=11 // pred_check_branch
        %145 = sbr.rel (%p143) target = $region20
      $region19: #{_forward_impl.11} parent=11 // pred_region
        _
      $region20: #{_forward_impl.11} parent=11 // pred_fallthru
        _
      // Predicated region
      $region21: #{_forward_impl.11} parent=11 // pred_check
        %p146 = pneg %p99
      $region22: #{_forward_impl.11} parent=11 // pred_check_branch
        %148 = sbr.rel (%p146) target = $region24
      $region23: #{_forward_impl.11} parent=11 // pred_region
        _
      $region24: #{_forward_impl.11} parent=11 // pred_fallthru
        _
    $region12: #{_forward_impl.11} parent=5 // pred_fallthru
      _
    %p149 = scmp.lt.s32.totalorder %s10, 2
    // Predicated region
    $region25: #{_forward_impl.11} parent=5 // pred_check
      %p150 = pneg %p149
    $region26: #{_forward_impl.11} parent=5 // pred_check_branch
      %152 = sbr.rel (%p150) target = $region28
    $region27: #{_forward_impl.11} parent=5 // pred_region
      // Predicated region
      $region29: #{_forward_impl.11} parent=27 // pred_check
        %p153 = pneg %p30
      $region30: #{_forward_impl.11} parent=27 // pred_check_branch
        %155 = sbr.rel (%p153) target = $region32
      $region31: #{_forward_impl.11} parent=27 // pred_region
        %p156 = scmp.lt.s32.totalorder %s10, 1
        %s157 = scalar_select %p156, %s10, 1
        %s158 = smul.addr %s157, 2
        %s159 = smul.addr %s158, 8
        %s160 = scalar_lea.vmem %s0, %s159
      $region32: #{_forward_impl.11} parent=27 // pred_fallthru
        _
    $region28: #{_forward_impl.11} parent=5 // pred_fallthru
      _
    %p161 = scmp.le.s32.totalorder 1, %s10
    %p162 = scmp.lt.s32.totalorder %s10, 3
    %p163 = pnand %p161, %p162
    %p164 = pneg %p163
    // Predicated region
    $region33: #{_forward_impl.11} parent=5 // pred_check
      _
    $region34: #{_forward_impl.11} parent=5 // pred_check_branch
      %166 = sbr.rel (%p163) target = $region36
    $region35: #{_forward_impl.11} parent=5 // pred_region
      %s167 = ssub.s32 %s10, 1
      %p168 = scmp.lt.s32.totalorder %s15, 1
      %s169 = scalar_select %p168, %s15, 1
      %s170 = smul.addr %s169, 2
      %s171 = smul.addr %s170, 8
      %s172 = scalar_lea.vmem %s0, %s171
      %p173 = pneg %p36
      %p174 = pneg %p33
      %p175 = pneg %p57
      %p176 = pneg %p54
      %p177 = pneg %p78
      %p178 = pneg %p75
      %p179 = pneg %p99
      %p180 = pneg %p96
      %p181 = pneg %p125
      %p182 = pneg %p122
      %p183 = scmp.lt.s32.totalorder %s15, 1
      %s184 = scalar_select %p183, %s15, 1
      %s185 = smul.addr %s184, 4
      %s186 = smul.addr %s185, 8
      %s187 = scalar_lea.vmem %s4, %s186
      %p188 = scmp.lt.s32.totalorder %s15, 1
      %s189 = scalar_select %p188, %s15, 1
      %s190 = smul.addr %s189, 2
      %s191 = smul.addr %s190, 8
      %s192 = scalar_lea.vmem %s0, %s191
      %p193 = scmp.lt.s32.totalorder %s15, 1
      %s194 = scalar_select %p193, %s15, 1
      %s195 = smul.addr %s194, 4
      %s196 = smul.addr %s195, 8
      %s197 = scalar_lea.vmem %s4, %s196
      %v199 = vld [vmem:[%s192] sm:$0xff]
      %v200 = vld [vmem:[%s192 + $0x8] sm:$0xf]
      %v201 = vld [vmem:[%s1] sm:$0xff]
      %v202 = vld [vmem:[%s1 + $0x8] sm:$0xf]
      %204 = vset.pattern.permute.xlu0 0
      %205 = vperm.xlu0 %204, %v201
      %v206 = vpop.permute.xlu0 %205
      %209 = vset.pattern.permute.xlu0 0
      %210 = vperm.xlu0 %209, %v202
      %v211 = vpop.permute.xlu0 %210
      %v213 = vmul.f32 %v199, %v206
      %v214 = vmul.f32 %v200, %v211
      %v215 = vld [vmem:[%s2] sm:$0xff]
      %v216 = vld [vmem:[%s2 + $0x8] sm:$0xf]
      %218 = vset.pattern.permute.xlu0 0
      %219 = vperm.xlu0 %218, %v215
      %v220 = vpop.permute.xlu0 %219
      %223 = vset.pattern.permute.xlu0 0
      %224 = vperm.xlu0 %223, %v216
      %v225 = vpop.permute.xlu0 %224
      %v227 = vadd.f32 %v213, %v220
      %v228 = vadd.f32 %v214, %v225
      %v229 = vmax.f32 %v227, 0.0
      %v230 = vmax.f32 %v228, 0.0
      %v231 = vpack.c.bf16 %v230, %v229
      %v232 = vld [vmem:[%s3] sm:$0xff]
      %v233 = vld [vmem:[%s3 + $0x8] sm:$0xff]
      %v236 = vunpack.c.l.b16 %v232
      %v237 = vunpack.c.h.b16 %v232
      %v238 = vunpack.c.l.b16 %v233
      %v239 = vunpack.c.h.b16 %v233
      %v240 = vpack.c.b16 %v238, %v236
      %v241 = vpack.c.b16 %v239, %v237
      %vm244 = vcmask 130048
      %v246 = vsel %vm244, %v231, 0
      %248 = vmatprep.subr.bf16.mxu0 0
      %249 = vmatpush1.bf16.msra.mxu0 0
      %250 = vmatprep.subr.bf16.mxu0 0
      %251 = vmatpush1.bf16.msra.mxu0 0
      %252 = vmatprep.subr.bf16.mxu0 0
      %253 = vmatpush1.bf16.msra.mxu0 0
      %254 = vmatprep.subr.bf16.mxu0 0
      %255 = vmatpush1.bf16.msra.mxu0 0
      %256 = vmatprep.subr.bf16.mxu0 0
      %257 = vmatpush1.bf16.msra.mxu0 0
      %258 = vmatprep.subr.bf16.mxu0 0
      %259 = vmatpush1.bf16.msra.mxu0 0
      %260 = vmatprep.subr.bf16.mxu0 0
      %261 = vmatpush1.bf16.msra.mxu0 0
      %262 = vmatprep.subr.bf16.mxu0 %v241
      %263 = vmatpush1.bf16.msra.mxu0 %v240
      %264 = vmatprep.subr.bf16.mxu0 0
      %265 = vmatpush2.bf16.msra.mxu0 0
      %266 = vmatprep.subr.bf16.mxu0 0
      %267 = vmatpush2.bf16.msra.mxu0 0
      %268 = vmatprep.subr.bf16.mxu0 0
      %269 = vmatpush2.bf16.msra.mxu0 0
      %270 = vmatprep.subr.bf16.mxu0 0
      %271 = vmatpush2.bf16.msra.mxu0 0
      %272 = vmatprep.subr.bf16.mxu0 0
      %273 = vmatpush2.bf16.msra.mxu0 0
      %274 = vmatprep.subr.bf16.mxu0 0
      %275 = vmatpush2.bf16.msra.mxu0 0
      %276 = vmatprep.subr.bf16.mxu0 0
      %277 = vmatpush2.bf16.msra.mxu0 0
      %278 = vmatprep.subr.bf16.mxu0 0
      %279 = vmatpush2.bf16.msra.mxu0 0
      %280 = vmatprep.mubr.bf16.mxu0 0
      %281 = vmatmul.mubr.bf16.gmra.mxu0 %v246
      %v282 = vpop.f32.mrf.mxu0
      %v283 = vadd.f32 0.0, %v282
      %v284 = vpop.f32.mrf.mxu0
      %v285 = vadd.f32 0.0, %v284
      %v286 = vpop.f32.mrf.mxu0
      %v287 = vadd.f32 0.0, %v286
      %v288 = vpop.f32.mrf.mxu0
      %v289 = vadd.f32 0.0, %v288
      %290 = vdwg.mxu0
      %291 = vst [vmem:[%s197] sm:$0xff] %v283
      %292 = vst [vmem:[%s197 + $0x8] sm:$0xff] %v285
      %293 = vst [vmem:[%s197 + $0x10] sm:$0xf] %v287
      %294 = vst [vmem:[%s197 + $0x18] sm:$0xf] %v289
      %p295 = scmp.lt.s32.totalorder %s15, 1
      %s296 = scalar_select %p295, %s15, 1
      %s297 = smul.addr %s296, 4
      %s298 = smul.addr %s297, 8
      %s299 = scalar_lea.vmem %s4, %s298
      // Predicated region
      $region37: #{_forward_impl.11} parent=35 // pred_check
        %p300 = pneg %p122
      $region38: #{_forward_impl.11} parent=35 // pred_check_branch
        %302 = sbr.rel (%p300) target = $region40
      $region39: #{_forward_impl.11} parent=35 // pred_region
        _
      $region40: #{_forward_impl.11} parent=35 // pred_fallthru
        _
    $region36: #{_forward_impl.11} parent=5 // pred_fallthru
      _
    %p303 = scmp.le.s32.totalorder 2, %s10
    // Predicated region
    $region41: #{_forward_impl.11} parent=5 // pred_check
      %p304 = pneg %p303
    $region42: #{_forward_impl.11} parent=5 // pred_check_branch
      %306 = sbr.rel (%p304) target = $region44
    $region43: #{_forward_impl.11} parent=5 // pred_region
      %s307 = ssub.s32 %s10, 2
      // Predicated region
      $region45: #{_forward_impl.11} parent=43 // pred_check
        %p308 = pneg %p128
      $region46: #{_forward_impl.11} parent=43 // pred_check_branch
        %310 = sbr.rel (%p308) target = $region48
      $region47: #{_forward_impl.11} parent=43 // pred_region
        %p311 = scmp.lt.s32.totalorder %s16, 1
        %s312 = scalar_select %p311, %s16, 1
        %s313 = smul.addr %s312, 4
        %s314 = smul.addr %s313, 8
        %s315 = scalar_lea.vmem %s4, %s314
      $region48: #{_forward_impl.11} parent=43 // pred_fallthru
        _
    $region44: #{_forward_impl.11} parent=5 // pred_fallthru
      _
  $region6: #{_forward_impl.11} parent=0 // loop_footer
    %s14 = sadd.s32 1, %s10
  $region7: #{_forward_impl.11} parent=0 // loop_footer_branch
    %9 = sbr.rel target = $region3
  $region8: #{_forward_impl.11} parent=0 // loop_exit
    _

// kernel: _forward_impl.9
$region0: #{_forward_impl.9}
  #allocation0 [shape = 'u32[]', space=smem, size = 0x4, offset = 0x4, fixed_abs, tag = 'smem constant byte address 0x4 - core index']
  #allocation1 [shape = 'u32[144,128]{1,0:T(1,128)}', space=vmem, size = 0x12000, scoped, tag = 'internal scratch']
  %s0 = inlined_call_operand.vmem [shape: f32[2,8,64], index: 0, kind: input, shape index: {}]
  %s1 = inlined_call_operand.vmem [shape: f32[8,1], index: 1, kind: input, shape index: {}]
  %s2 = inlined_call_operand.vmem [shape: f32[8,1], index: 2, kind: input, shape index: {}]
  %s3 = inlined_call_operand.vmem [shape: bf16[64,256], index: 3, kind: input, shape index: {}]
  %s4 = inlined_call_operand.vmem [shape: f32[2,8,256], index: 4, kind: output, shape index: {}]
  %s5 = sld [smem:[#allocation0]]
  $region49: #{_forward_impl.9} parent=0
    _
  %s7 = ssub.s32 1, %s5
  %s8 = scalar_select 0, %s7, %s5
  loop: start=0, step=1, limit=4
  $region2: #{_forward_impl.9} parent=0 // loop_pre_header
    _
  $region3: #{_forward_impl.9} parent=0 // loop_header
    %s10 = sphi 0, %s14
    %p11 = scmp.ge.s32.totalorder %s10, 4
    %s20 = sphi 0, %s22
    %s23 = sphi 0, %s20
    %s24 = sphi 0, %s23
    %s40 = sphi 0, %s24
    %s44 = sphi 0, %s44
    %s46 = sphi 0, %s44
    %s47 = sphi 0, %s46
    %s61 = sphi 0, %s47
    %s65 = sphi 0, %s65
    %s67 = sphi 0, %s65
    %s68 = sphi 0, %s67
    %s82 = sphi 0, %s68
    %s86 = sphi 0, %s86
    %s88 = sphi 0, %s86
    %s89 = sphi 0, %s88
    %s103 = sphi 0, %s89
    %s109 = sphi 0, %s111
    %s112 = sphi 0, %s109
    %s113 = sphi 0, %s112
    %s129 = sphi 0, %s113
  $region4: #{_forward_impl.9} parent=0 // loop_header_branch
    %13 = sbr.rel (%p11) target = $region8
  $region5: #{_forward_impl.9} parent=0 // loop_body
    %s15 = ssub.s32 %s10, 1
    %s16 = ssub.s32 %s10, 2
    %s17 = sadd.s32 %s10, 1
    %s18 = ssub.s32 %s10, %s17
    %p19 = scmp.eq.s32.totalorder %s18, 0
    %s21 = sadd.s32 %s20, 1
    %s22 = scalar_select %p19, %s20, %s21
    %p25 = pneg %p19
    %p26 = scmp.eq.s32.totalorder %s10, 1
    %p27 = por %p25, %p26
    %p28 = scmp.ne.s32.totalorder %s20, %s23
    %p29 = scmp.eq.s32.totalorder %s10, 0
    %p30 = por %p28, %p29
    %p31 = scmp.ne.s32.totalorder %s20, %s23
    %p32 = scmp.eq.s32.totalorder %s15, 1
    %p33 = por %p31, %p32
    %p34 = scmp.ne.s32.totalorder %s23, %s24
    %p35 = scmp.eq.s32.totalorder %s15, 0
    %p36 = por %p34, %p35
    %p37 = scmp.ne.s32.totalorder %s23, %s24
    %p38 = scmp.eq.s32.totalorder %s16, 1
    %p39 = por %p37, %p38
    %p41 = scmp.ne.s32.totalorder %s24, %s40
    %p42 = scmp.eq.s32.totalorder %s16, 0
    %p43 = por %p41, %p42
    %s45 = sadd.s32 %s44, 1
    %p48 = scmp.eq.s32.totalorder %s10, 1
    %p49 = scmp.ne.s32.totalorder %s44, %s46
    %p50 = scmp.eq.s32.totalorder %s10, 0
    %p51 = por %p49, %p50
    %p52 = scmp.ne.s32.totalorder %s44, %s46
    %p53 = scmp.eq.s32.totalorder %s15, 1
    %p54 = por %p52, %p53
    %p55 = scmp.ne.s32.totalorder %s46, %s47
    %p56 = scmp.eq.s32.totalorder %s15, 0
    %p57 = por %p55, %p56
    %p58 = scmp.ne.s32.totalorder %s46, %s47
    %p59 = scmp.eq.s32.totalorder %s16, 1
    %p60 = por %p58, %p59
    %p62 = scmp.ne.s32.totalorder %s47, %s61
    %p63 = scmp.eq.s32.totalorder %s16, 0
    %p64 = por %p62, %p63
    %s66 = sadd.s32 %s65, 1
    %p69 = scmp.eq.s32.totalorder %s10, 1
    %p70 = scmp.ne.s32.totalorder %s65, %s67
    %p71 = scmp.eq.s32.totalorder %s10, 0
    %p72 = por %p70, %p71
    %p73 = scmp.ne.s32.totalorder %s65, %s67
    %p74 = scmp.eq.s32.totalorder %s15, 1
    %p75 = por %p73, %p74
    %p76 = scmp.ne.s32.totalorder %s67, %s68
    %p77 = scmp.eq.s32.totalorder %s15, 0
    %p78 = por %p76, %p77
    %p79 = scmp.ne.s32.totalorder %s67, %s68
    %p80 = scmp.eq.s32.totalorder %s16, 1
    %p81 = por %p79, %p80
    %p83 = scmp.ne.s32.totalorder %s68, %s82
    %p84 = scmp.eq.s32.totalorder %s16, 0
    %p85 = por %p83, %p84
    %s87 = sadd.s32 %s86, 1
    %p90 = scmp.eq.s32.totalorder %s10, 1
    %p91 = scmp.ne.s32.totalorder %s86, %s88
    %p92 = scmp.eq.s32.totalorder %s10, 0
    %p93 = por %p91, %p92
    %p94 = scmp.ne.s32.totalorder %s86, %s88
    %p95 = scmp.eq.s32.totalorder %s15, 1
    %p96 = por %p94, %p95
    %p97 = scmp.ne.s32.totalorder %s88, %s89
    %p98 = scmp.eq.s32.totalorder %s15, 0
    %p99 = por %p97, %p98
    %p100 = scmp.ne.s32.totalorder %s88, %s89
    %p101 = scmp.eq.s32.totalorder %s16, 1
    %p102 = por %p100, %p101
    %p104 = scmp.ne.s32.totalorder %s89, %s103
    %p105 = scmp.eq.s32.totalorder %s16, 0
    %p106 = por %p104, %p105
    %s107 = ssub.s32 %s10, %s17
    %p108 = scmp.eq.s32.totalorder %s107, 0
    %s110 = sadd.s32 %s109, 1
    %s111 = scalar_select %p108, %s109, %s110
    %p114 = pneg %p108
    %p115 = scmp.eq.s32.totalorder %s10, 1
    %p116 = por %p114, %p115
    %p117 = scmp.ne.s32.totalorder %s109, %s112
    %p118 = scmp.eq.s32.totalorder %s10, 0
    %p119 = por %p117, %p118
    %p120 = scmp.ne.s32.totalorder %s109, %s112
    %p121 = scmp.eq.s32.totalorder %s15, 1
    %p122 = por %p120, %p121
    %p123 = scmp.ne.s32.totalorder %s112, %s113
    %p124 = scmp.eq.s32.totalorder %s15, 0
    %p125 = por %p123, %p124
    %p126 = scmp.ne.s32.totalorder %s112, %s113
    %p127 = scmp.eq.s32.totalorder %s16, 1
    %p128 = por %p126, %p127
    %p130 = scmp.ne.s32.totalorder %s113, %s129
    %p131 = scmp.eq.s32.totalorder %s16, 0
    %p132 = por %p130, %p131
    %p133 = scmp.le.s32.totalorder 1, %s10
    %p134 = scmp.lt.s32.totalorder %s10, 3
    %p135 = pnand %p133, %p134
    %p136 = pneg %p135
    // Predicated region
    $region9: #{_forward_impl.9} parent=5 // pred_check
      _
    $region10: #{_forward_impl.9} parent=5 // pred_check_branch
      %138 = sbr.rel (%p135) target = $region12
    $region11: #{_forward_impl.9} parent=5 // pred_region
      %s139 = ssub.s32 %s10, 1
      // Predicated region
      $region13: #{_forward_impl.9} parent=11 // pred_check
        %p140 = pneg %p57
      $region14: #{_forward_impl.9} parent=11 // pred_check_branch
        %142 = sbr.rel (%p140) target = $region16
      $region15: #{_forward_impl.9} parent=11 // pred_region
        _
      $region16: #{_forward_impl.9} parent=11 // pred_fallthru
        _
      // Predicated region
      $region17: #{_forward_impl.9} parent=11 // pred_check
        %p143 = pneg %p78
      $region18: #{_forward_impl.9} parent=11 // pred_check_branch
        %145 = sbr.rel (%p143) target = $region20
      $region19: #{_forward_impl.9} parent=11 // pred_region
        _
      $region20: #{_forward_impl.9} parent=11 // pred_fallthru
        _
      // Predicated region
      $region21: #{_forward_impl.9} parent=11 // pred_check
        %p146 = pneg %p99
      $region22: #{_forward_impl.9} parent=11 // pred_check_branch
        %148 = sbr.rel (%p146) target = $region24
      $region23: #{_forward_impl.9} parent=11 // pred_region
        _
      $region24: #{_forward_impl.9} parent=11 // pred_fallthru
        _
    $region12: #{_forward_impl.9} parent=5 // pred_fallthru
      _
    %p149 = scmp.lt.s32.totalorder %s10, 2
    // Predicated region
    $region25: #{_forward_impl.9} parent=5 // pred_check
      %p150 = pneg %p149
    $region26: #{_forward_impl.9} parent=5 // pred_check_branch
      %152 = sbr.rel (%p150) target = $region28
    $region27: #{_forward_impl.9} parent=5 // pred_region
      // Predicated region
      $region29: #{_forward_impl.9} parent=27 // pred_check
        %p153 = pneg %p30
      $region30: #{_forward_impl.9} parent=27 // pred_check_branch
        %155 = sbr.rel (%p153) target = $region32
      $region31: #{_forward_impl.9} parent=27 // pred_region
        %p156 = scmp.lt.s32.totalorder %s10, 1
        %s157 = scalar_select %p156, %s10, 1
        %s158 = smul.addr %s157, 8
        %s159 = scalar_lea.vmem %s0, %s158
      $region32: #{_forward_impl.9} parent=27 // pred_fallthru
        _
    $region28: #{_forward_impl.9} parent=5 // pred_fallthru
      _
    %p160 = scmp.le.s32.totalorder 1, %s10
    %p161 = scmp.lt.s32.totalorder %s10, 3
    %p162 = pnand %p160, %p161
    %p163 = pneg %p162
    // Predicated region
    $region33: #{_forward_impl.9} parent=5 // pred_check
      _
    $region34: #{_forward_impl.9} parent=5 // pred_check_branch
      %165 = sbr.rel (%p162) target = $region36
    $region35: #{_forward_impl.9} parent=5 // pred_region
      %s166 = ssub.s32 %s10, 1
      %p167 = scmp.lt.s32.totalorder %s15, 1
      %s168 = scalar_select %p167, %s15, 1
      %s169 = smul.addr %s168, 8
      %s170 = scalar_lea.vmem %s0, %s169
      %p171 = pneg %p36
      %p172 = pneg %p33
      %p173 = pneg %p57
      %p174 = pneg %p54
      %p175 = pneg %p78
      %p176 = pneg %p75
      %p177 = pneg %p99
      %p178 = pneg %p96
      %p179 = pneg %p125
      %p180 = pneg %p122
      %p181 = scmp.lt.s32.totalorder %s15, 1
      %s182 = scalar_select %p181, %s15, 1
      %s183 = smul.addr %s182, 2
      %s184 = smul.addr %s183, 8
      %s185 = scalar_lea.vmem %s4, %s184
      %p186 = scmp.lt.s32.totalorder %s15, 1
      %s187 = scalar_select %p186, %s15, 1
      %s188 = smul.addr %s187, 8
      %s189 = scalar_lea.vmem %s0, %s188
      %p190 = scmp.lt.s32.totalorder %s15, 1
      %s191 = scalar_select %p190, %s15, 1
      %s192 = smul.addr %s191, 2
      %s193 = smul.addr %s192, 8
      %s194 = scalar_lea.vmem %s4, %s193
      %v196 = vld [vmem:[%s189] sm:$0xff]
      %v197 = vld [vmem:[%s1] sm:$0xff]
      %199 = vset.pattern.permute.xlu0 0
      %200 = vperm.xlu0 %199, %v197
      %v201 = vpop.permute.xlu0 %200
      %v203 = vmul.f32 %v196, %v201
      %v204 = vld [vmem:[%s2] sm:$0xff]
      %206 = vset.pattern.permute.xlu0 0
      %207 = vperm.xlu0 %206, %v204
      %v208 = vpop.permute.xlu0 %207
      %v210 = vadd.f32 %v203, %v208
      %v211 = vmax.f32 %v210, 0.0
      %v212 = vpack.c.bf16 %v211, %v211
      %v213 = vld [vmem:[%s3] sm:$0xff]
      %v214 = vld [vmem:[%s3 + $0x8] sm:$0xff]
      %v215 = vld [vmem:[%s3 + $0x10] sm:$0xff]
      %v216 = vld [vmem:[%s3 + $0x18] sm:$0xff]
      %v217 = vld [vmem:[%s3 + $0x20] sm:$0xff]
      %v218 = vld [vmem:[%s3 + $0x28] sm:$0xff]
      %v219 = vld [vmem:[%s3 + $0x30] sm:$0xff]
      %v220 = vld [vmem:[%s3 + $0x38] sm:$0xff]
      %v229 = vunpack.c.l.b16 %v213
      %v230 = vunpack.c.h.b16 %v213
      %v231 = vunpack.c.l.b16 %v214
      %v232 = vunpack.c.h.b16 %v214
      %v233 = vunpack.c.l.b16 %v215
      %v234 = vunpack.c.h.b16 %v215
      %v235 = vunpack.c.l.b16 %v216
      %v236 = vunpack.c.h.b16 %v216
      %v237 = vunpack.c.l.b16 %v217
      %v238 = vunpack.c.h.b16 %v217
      %v239 = vunpack.c.l.b16 %v218
      %v240 = vunpack.c.h.b16 %v218
      %v241 = vunpack.c.l.b16 %v219
      %v242 = vunpack.c.h.b16 %v219
      %v243 = vunpack.c.l.b16 %v220
      %v244 = vunpack.c.h.b16 %v220
      %v245 = vpack.c.b16 %v231, %v229
      %v246 = vpack.c.b16 %v232, %v230
      %v247 = vpack.c.b16 %v235, %v233
      %v248 = vpack.c.b16 %v236, %v234
      %v249 = vpack.c.b16 %v239, %v237
      %v250 = vpack.c.b16 %v240, %v238
      %v251 = vpack.c.b16 %v243, %v241
      %v252 = vpack.c.b16 %v244, %v242
      %vm261 = vcmask 523264
      %v263 = vsel %vm261, %v212, 0
      %265 = vmatprep.subr.bf16.mxu0 0
      %266 = vmatpush1.bf16.msra.mxu0 0
      %267 = vmatprep.subr.bf16.mxu0 0
      %268 = vmatpush1.bf16.msra.mxu0 0
      %269 = vmatprep.subr.bf16.mxu0 0
      %270 = vmatpush1.bf16.msra.mxu0 0
      %271 = vmatprep.subr.bf16.mxu0 0
      %272 = vmatpush1.bf16.msra.mxu0 0
      %273 = vmatprep.subr.bf16.mxu0 %v252
      %274 = vmatpush1.bf16.msra.mxu0 %v251
      %275 = vmatprep.subr.bf16.mxu0 %v250
      %276 = vmatpush1.bf16.msra.mxu0 %v249
      %277 = vmatprep.subr.bf16.mxu0 %v248
      %278 = vmatpush1.bf16.msra.mxu0 %v247
      %279 = vmatprep.subr.bf16.mxu0 %v246
      %280 = vmatpush1.bf16.msra.mxu0 %v245
      %281 = vmatprep.subr.bf16.mxu0 0
      %282 = vmatpush2.bf16.msra.mxu0 0
      %283 = vmatprep.subr.bf16.mxu0 0
      %284 = vmatpush2.bf16.msra.mxu0 0
      %285 = vmatprep.subr.bf16.mxu0 0
      %286 = vmatpush2.bf16.msra.mxu0 0
      %287 = vmatprep.subr.bf16.mxu0 0
      %288 = vmatpush2.bf16.msra.mxu0 0
      %289 = vmatprep.subr.bf16.mxu0 0
      %290 = vmatpush2.bf16.msra.mxu0 0
      %291 = vmatprep.subr.bf16.mxu0 0
      %292 = vmatpush2.bf16.msra.mxu0 0
      %293 = vmatprep.subr.bf16.mxu0 0
      %294 = vmatpush2.bf16.msra.mxu0 0
      %295 = vmatprep.subr.bf16.mxu0 0
      %296 = vmatpush2.bf16.msra.mxu0 0
      %297 = vmatprep.mubr.bf16.mxu0 0
      %298 = vmatmul.mubr.bf16.gmra.mxu0 %v263
      %v299 = vpop.f32.mrf.mxu0
      %v300 = vadd.f32 0.0, %v299
      %v301 = vpop.f32.mrf.mxu0
      %v302 = vadd.f32 0.0, %v301
      %v303 = vpop.f32.mrf.mxu0
      %v304 = vpop.f32.mrf.mxu0
      %305 = vdwg.mxu0
      %306 = vst [vmem:[%s194] sm:$0xff] %v300
      %307 = vst [vmem:[%s194 + $0x8] sm:$0xff] %v302
      %p308 = scmp.lt.s32.totalorder %s15, 1
      %s309 = scalar_select %p308, %s15, 1
      %s310 = smul.addr %s309, 2
      %s311 = smul.addr %s310, 8
      %s312 = scalar_lea.vmem %s4, %s311
      // Predicated region
      $region37: #{_forward_impl.9} parent=35 // pred_check
        %p313 = pneg %p122
      $region38: #{_forward_impl.9} parent=35 // pred_check_branch
        %315 = sbr.rel (%p313) target = $region40
      $region39: #{_forward_impl.9} parent=35 // pred_region
        _
      $region40: #{_forward_impl.9} parent=35 // pred_fallthru
        _
    $region36: #{_forward_impl.9} parent=5 // pred_fallthru
      _
    %p316 = scmp.le.s32.totalorder 2, %s10
    // Predicated region
    $region41: #{_forward_impl.9} parent=5 // pred_check
      %p317 = pneg %p316
    $region42: #{_forward_impl.9} parent=5 // pred_check_branch
      %319 = sbr.rel (%p317) target = $region44
    $region43: #{_forward_impl.9} parent=5 // pred_region
      %s320 = ssub.s32 %s10, 2
      // Predicated region
      $region45: #{_forward_impl.9} parent=43 // pred_check
        %p321 = pneg %p128
      $region46: #{_forward_impl.9} parent=43 // pred_check_branch
        %323 = sbr.rel (%p321) target = $region48
      $region47: #{_forward_impl.9} parent=43 // pred_region
        %p324 = scmp.lt.s32.totalorder %s16, 1
        %s325 = scalar_select %p324, %s16, 1
        %s326 = smul.addr %s325, 2
        %s327 = smul.addr %s326, 8
        %s328 = scalar_lea.vmem %s4, %s327
      $region48: #{_forward_impl.9} parent=43 // pred_fallthru
        _
    $region44: #{_forward_impl.9} parent=5 // pred_fallthru
      _
  $region6: #{_forward_impl.9} parent=0 // loop_footer
    %s14 = sadd.s32 1, %s10
  $region7: #{_forward_impl.9} parent=0 // loop_footer_branch
    %9 = sbr.rel target = $region3
  $region8: #{_forward_impl.9} parent=0 // loop_exit
    _

</llo_original>
